<compile_context>
chip_gen: v5e
topology: v5e:2x2
jax: 0.10.0
libtpu: 0.0.40
codegen_flags: <defaults>
</compile_context>

<pallas_src>
import functools

import jax
import jax.numpy as jnp
from jax.experimental import pallas as pl
from jax.experimental.pallas import tpu as pltpu


def _round_up(x, m):
    return (x + m - 1) // m * m


def _fold_bn(gamma, beta, mean, var, eps=1e-5):
    scale = gamma / jnp.sqrt(var + eps)
    bias = beta - mean * scale
    return scale, bias


def _make_kernel(*, W, Wo, RB, stride, n_t_rows, cin, cexp_p, cout,
                 has_expand, has_bot_pad, use_res, out_dtype):
    s = stride

    def kernel(x_ref, w_exp_ref, be_ref, w_dw_ref, bd_ref, w_pj_ref, bp_ref,
               o_ref, tpad_ref):
        rb = pl.program_id(1)

        # Rows of the (1-row zero-padded) input needed by this output block.
        xp_start = pl.multiple_of(rb * (RB * s), RB * s)
        xwin = x_ref[0, pl.ds(xp_start, n_t_rows), :, :]       # (n_t_rows, W, Cin)

        # ---- 1x1 expand conv (BN scale pre-folded) + bias + ReLU6 : MXU ----
        if has_expand:
            t2d = jnp.dot(
                xwin.reshape(n_t_rows * W, cin).astype(jnp.bfloat16),
                w_exp_ref[...],                                 # bf16 (Cin, Cexp_p)
                preferred_element_type=jnp.float32)             # (rows*W, Cexp_p)
            t2d = jnp.clip(t2d + be_ref[...], 0.0, 6.0)
            t3 = t2d.reshape(n_t_rows, W, cexp_p)
        else:
            t3 = xwin.astype(jnp.float32)

        # ---- stage t into the halo-padded scratch (interior only) ----------
        tpad_ref[:, 1:1 + W, :] = t3
        zcol = jnp.zeros((n_t_rows, 1, cexp_p), jnp.float32)
        tpad_ref[:, 0:1, :] = zcol                              # left halo col
        tpad_ref[:, W + 1:W + 2, :] = zcol                      # right halo col

        zrow = jnp.zeros((1, W + 2, cexp_p), jnp.float32)

        @pl.when(rb == 0)                                       # top image edge
        def _():
            tpad_ref[0:1, :, :] = zrow

        if has_bot_pad:
            @pl.when(rb == pl.num_programs(1) - 1)              # bottom image edge
            def _():
                tpad_ref[n_t_rows - 1:n_t_rows, :, :] = zrow

        # ---- 3x3 depthwise (taps pre-scaled by BN) + bias + ReLU6 : VPU f32 --
        acc = jnp.zeros((RB, Wo, cexp_p), jnp.float32)
        for kh in range(3):
            for kw in range(3):
                if s == 1:
                    win = tpad_ref[kh:kh + RB, kw:kw + Wo, :]
                else:
                    win = tpad_ref[pl.ds(kh, RB, stride=s),
                                   pl.ds(kw, Wo, stride=s), :]
                acc = acc + win * w_dw_ref[kh * 3 + kw, :]
        acc = jnp.clip(acc + bd_ref[...], 0.0, 6.0)

        # ---- 1x1 project conv (BN scale pre-folded) + bias : MXU ------------
        y2d = jnp.dot(acc.reshape(RB * Wo, cexp_p).astype(jnp.bfloat16),
                      w_pj_ref[...],                            # bf16 (Cexp_p, Cout)
                      preferred_element_type=jnp.float32)       # (RB*Wo, Cout)
        y2d = y2d + bp_ref[...]
        y3 = y2d.reshape(RB, Wo, cout)

        if use_res:                                   # stride==1 and Cin==Cout
            y3 = y3 + xwin[1:1 + RB].astype(jnp.float32)

        o_ref[0] = y3.astype(out_dtype)

    return kernel


def inverted_residual_nhwc(x, params, *, stride, expand_ratio, row_block=8):
    """x: (N, H, W, Cin) NHWC.  Returns (N, Ho, Wo, Cout) NHWC."""
    N, H, W, Cin = x.shape
    w_exp, bn_e, w_dw, bn_d, w_pj, bn_p = params
    Cexp = w_dw.shape[-1]
    Cout = w_pj.shape[-1]
    s = stride
    Ho = (H - 1) // s + 1
    Wo = (W - 1) // s + 1
    use_res = (s == 1) and (Cin == Cout)
    has_expand = expand_ratio != 1

    # Output-row block: largest divisor of Ho not exceeding `row_block`.
    RB = max(r for r in range(1, min(row_block, Ho) + 1) if Ho % r == 0)
    n_rb = Ho // RB
    n_t_rows = (RB - 1) * s + 3               # expanded rows needed per block
    has_bot_pad = (Ho - 1) * s + 1 >= H       # is the bottom zero row ever read?

    # ---- fold eval-mode BN into weights / biases ---------------------------
    se, be = _fold_bn(*bn_e)
    sd, bd = _fold_bn(*bn_d)
    sp, bp = _fold_bn(*bn_p)

    # ---- pad expanded channels to a multiple of 128 (lane-dense) -----------
    if has_expand:
        cexp_p = _round_up(Cexp, 128)
        w_exp_f = jnp.zeros((Cin, cexp_p), jnp.bfloat16)
        w_exp_f = w_exp_f.at[:, :Cexp].set((w_exp * se[None, :]).astype(jnp.bfloat16))
        be_f = jnp.zeros((1, cexp_p), jnp.float32).at[:, :Cexp].set(be[None, :])
    else:
        cexp_p = Cexp                          # activations come straight from x
        w_exp_f = jnp.zeros((Cin, cexp_p), jnp.bfloat16)   # unused dummy
        be_f = jnp.zeros((1, cexp_p), jnp.float32)         # unused dummy

    w_dw_f = jnp.zeros((9, cexp_p), jnp.float32)
    w_dw_f = w_dw_f.at[:, :Cexp].set(w_dw.reshape(9, Cexp) * sd[None, :])
    bd_f = jnp.zeros((1, cexp_p), jnp.float32).at[:, :Cexp].set(bd[None, :])

    w_pj_f = jnp.zeros((cexp_p, Cout), jnp.bfloat16)
    w_pj_f = w_pj_f.at[:Cexp, :].set((w_pj * sp[None, :]).astype(jnp.bfloat16))
    bp_f = bp[None, :].astype(jnp.float32)

    # One zero row of padding top & bottom -> every depthwise row window read
    # inside the kernel is in-bounds (no clamping / special cases).
    xp = jnp.pad(x, ((0, 0), (1, 1), (0, 0), (0, 0)))

    kernel = _make_kernel(W=W, Wo=Wo, RB=RB, stride=s, n_t_rows=n_t_rows,
                          cin=Cin, cexp_p=cexp_p, cout=Cout,
                          has_expand=has_expand, has_bot_pad=has_bot_pad,
                          use_res=use_res, out_dtype=x.dtype)

    const2 = lambda n, rb: (0, 0)
    out = pl.pallas_call(
        kernel,
        out_shape=jax.ShapeDtypeStruct((N, Ho, Wo, Cout), x.dtype),
        grid_spec=pltpu.PrefetchScalarGridSpec(
            num_scalar_prefetch=0,
            grid=(N, n_rb),
            in_specs=[
                pl.BlockSpec((1, H + 2, W, Cin), lambda n, rb: (n, 0, 0, 0)),
                pl.BlockSpec((Cin, cexp_p), const2),
                pl.BlockSpec((1, cexp_p), const2),
                pl.BlockSpec((9, cexp_p), const2),
                pl.BlockSpec((1, cexp_p), const2),
                pl.BlockSpec((cexp_p, Cout), const2),
                pl.BlockSpec((1, Cout), const2),
            ],
            out_specs=pl.BlockSpec((1, RB, Wo, Cout), lambda n, rb: (n, rb, 0, 0)),
            scratch_shapes=[pltpu.VMEM((n_t_rows, W + 2, cexp_p), jnp.float32)],
        ),
        compiler_params=pltpu.CompilerParams(
            dimension_semantics=("parallel", "parallel"),
            vmem_limit_bytes=32 * 1024 * 1024),
    )(xp, w_exp_f, be_f, w_dw_f, bd_f, w_pj_f, bp_f)
    return out


def inverted_residual(x_nchw, params, *, stride, expand_ratio):
    """NCHW wrapper matching the PyTorch module's interface."""
    x = jnp.transpose(x_nchw, (0, 2, 3, 1))                    # -> NHWC
    out = inverted_residual_nhwc(x, params, stride=stride,
                                 expand_ratio=expand_ratio)
    return jnp.transpose(out, (0, 3, 1, 2))                    # -> NCHW


# ---------------- pure-JAX reference for verification -----------------------
# Mirrors the kernel's numerics: eval-mode BN folded into weights, 1x1 convs
# with bf16 operands / f32 accumulation (the deliberate MXU precision choice),
# depthwise / ReLU6 / residual in f32.
def reference(x_nchw, params, *, stride, expand_ratio):
    x = jnp.transpose(x_nchw, (0, 2, 3, 1)).astype(jnp.float32)
    N, H, W, Cin = x.shape
    w_exp, bn_e, w_dw, bn_d, w_pj, bn_p = params
    Cexp = w_dw.shape[-1]
    Cout = w_pj.shape[-1]
    s = stride
    Ho = (H - 1) // s + 1
    Wo = (W - 1) // s + 1
    se, be = _fold_bn(*bn_e)
    sd, bd = _fold_bn(*bn_d)
    sp, bp = _fold_bn(*bn_p)

    if expand_ratio != 1:
        we = (w_exp * se[None, :]).astype(jnp.bfloat16)
        t = jnp.einsum('nhwc,ce->nhwe', x.astype(jnp.bfloat16), we,
                       preferred_element_type=jnp.float32)
        t = jnp.clip(t + be, 0.0, 6.0)
    else:
        t = x
    tp = jnp.pad(t, ((0, 0), (1, 1), (1, 1), (0, 0)))
    wdw = w_dw.reshape(9, Cexp) * sd[None, :]
    acc = jnp.zeros((N, Ho, Wo, Cexp), jnp.float32)
    for kh in range(3):
        for kw in range(3):
            win = tp[:, kh:kh + (Ho - 1) * s + 1:s,
                     kw:kw + (Wo - 1) * s + 1:s, :]
            acc = acc + win * wdw[kh * 3 + kw]
    acc = jnp.clip(acc + bd, 0.0, 6.0)
    wp = (w_pj * sp[None, :]).astype(jnp.bfloat16)
    y = jnp.einsum('nhwc,co->nhwo', acc.astype(jnp.bfloat16), wp,
                   preferred_element_type=jnp.float32)
    y = y + bp
    if s == 1 and Cin == Cout:
        y = y + x
    return jnp.transpose(y, (0, 3, 1, 2)).astype(x_nchw.dtype)


def make_params(key, cin, cout, expand_ratio):
    cexp = cin * expand_ratio
    ks = jax.random.split(key, 6)
    f32 = jnp.float32

    def bn(k, c):
        k1, k2, k3, k4 = jax.random.split(k, 4)
        gamma = jax.random.uniform(k1, (c,), f32, 0.5, 1.5)
        beta = jax.random.normal(k2, (c,), f32) * 0.1
        mean = jax.random.normal(k3, (c,), f32) * 0.1
        var = jax.random.uniform(k4, (c,), f32, 0.5, 1.5)
        return (gamma, beta, mean, var)

    w_exp = jax.random.normal(ks[0], (cin, cexp), f32) * 0.2    # 1x1 expand (Cin, Cexp)
    w_dw = jax.random.normal(ks[1], (3, 3, cexp), f32) * 0.2    # depthwise (3, 3, Cexp)
    w_pj = jax.random.normal(ks[2], (cexp, cout), f32) * 0.2    # 1x1 project (Cexp, Cout)
    return (w_exp, bn(ks[3], cexp), w_dw, bn(ks[4], cexp), w_pj, bn(ks[5], cout))


if __name__ == "__main__":
    key = jax.random.PRNGKey(0)
    kx, kp = jax.random.split(key)

    N, Cin, H, W = 2, 4, 16, 16
    Cout, stride, expand_ratio = 4, 1, 6      # stride=1, Cin==Cout -> residual path

    x = jax.random.normal(kx, (N, Cin, H, W), jnp.float32)
    params = make_params(kp, Cin, Cout, expand_ratio)

    fn = jax.jit(functools.partial(inverted_residual,
                                   stride=stride, expand_ratio=expand_ratio))
    out = fn(x, params)
    jax.block_until_ready(out)

    ref = reference(x, params, stride=stride, expand_ratio=expand_ratio)
    assert out.shape == ref.shape, (out.shape, ref.shape)
    max_err = float(jnp.max(jnp.abs(out - ref)))
    # bf16 MXU operands -> small, expected deviation vs. any f32 recomputation.
    assert jnp.allclose(out, ref, rtol=1e-2, atol=1e-2), max_err

    print("KERNEL_OK")
</pallas_src>

<mosaic_0001>
module attributes {stable_mosaic.version = 11 : i64} {
  func.func @kernel(%arg0: i32, %arg1: i32, %arg2: memref<1x18x16x4xf32, #tpu.memory_space<vmem>>, %arg3: memref<4x128xbf16, #tpu.memory_space<vmem>>, %arg4: memref<1x128xf32, #tpu.memory_space<vmem>>, %arg5: memref<9x128xf32, #tpu.memory_space<vmem>>, %arg6: memref<1x128xf32, #tpu.memory_space<vmem>>, %arg7: memref<128x4xbf16, #tpu.memory_space<vmem>>, %arg8: memref<1x4xf32, #tpu.memory_space<vmem>>, %arg9: memref<1x8x16x4xf32, #tpu.memory_space<vmem>>, %arg10: memref<10x18x128xf32, #tpu.memory_space<vmem>>) attributes {dimension_semantics = [#tpu.dimension_semantics<parallel>, #tpu.dimension_semantics<parallel>], iteration_bounds = array<i64: 2, 2>, scalar_prefetch = 0 : i64, scratch_operands = 1 : i64, tpu.core_type = #tpu.core_type<tc>, window_params = [{transform_indices = @transform_0, window_bounds = array<i64: 1, 18, 16, 4>}, {pipeline_mode = #tpu.pipeline_mode<synchronous>, transform_indices = @transform_1, window_bounds = array<i64: 4, 128>}, {pipeline_mode = #tpu.pipeline_mode<synchronous>, transform_indices = @transform_2, window_bounds = array<i64: 1, 128>}, {pipeline_mode = #tpu.pipeline_mode<synchronous>, transform_indices = @transform_3, window_bounds = array<i64: 9, 128>}, {pipeline_mode = #tpu.pipeline_mode<synchronous>, transform_indices = @transform_4, window_bounds = array<i64: 1, 128>}, {pipeline_mode = #tpu.pipeline_mode<synchronous>, transform_indices = @transform_5, window_bounds = array<i64: 128, 4>}, {pipeline_mode = #tpu.pipeline_mode<synchronous>, transform_indices = @transform_6, window_bounds = array<i64: 1, 4>}, {transform_indices = @transform_7, window_bounds = array<i64: 1, 8, 16, 4>}]} {
    %c8_i32 = arith.constant 8 : i32
    %0 = arith.muli %arg1, %c8_i32 : i32
    %1 = tpu.assume_multiple %0, 8 : i32
    %c0 = arith.constant 0 : index
    %2 = arith.index_cast %1 : i32 to index
    %c0_0 = arith.constant 0 : index
    %c0_1 = arith.constant 0 : index
    %3 = vector.load %arg2[%c0, %2, %c0_0, %c0_1] : memref<1x18x16x4xf32, #tpu.memory_space<vmem>>, vector<1x10x16x4xf32>
    %4 = vector.shape_cast %3 : vector<1x10x16x4xf32> to vector<10x16x4xf32>
    %5 = vector.shape_cast %4 : vector<10x16x4xf32> to vector<160x4xf32>
    %6 = arith.truncf %5 : vector<160x4xf32> to vector<160x4xbf16>
    %c0_2 = arith.constant 0 : index
    %c0_3 = arith.constant 0 : index
    %7 = vector.load %arg3[%c0_2, %c0_3] : memref<4x128xbf16, #tpu.memory_space<vmem>>, vector<4x128xbf16>
    %cst = arith.constant dense<0.000000e+00> : vector<160x128xf32>
    %8 = tpu.matmul %6, %7, %cst {dimension_numbers = #tpu.dot_dimension_numbers<[1], [0], [0], [1], [0, 0, 1, 1], [], []>} : vector<160x4xbf16>, vector<4x128xbf16>, vector<160x128xf32> -> vector<160x128xf32>
    %c0_4 = arith.constant 0 : index
    %c0_5 = arith.constant 0 : index
    %9 = vector.load %arg4[%c0_4, %c0_5] : memref<1x128xf32, #tpu.memory_space<vmem>>, vector<1x128xf32>
    %10 = vector.broadcast %9 : vector<1x128xf32> to vector<160x128xf32>
    %11 = arith.addf %8, %10 : vector<160x128xf32>
    %cst_6 = arith.constant 0.000000e+00 : f32
    %cst_7 = arith.constant 6.000000e+00 : f32
    %12 = vector.broadcast %cst_6 : f32 to vector<160x128xf32>
    %13 = arith.maximumf %12, %11 : vector<160x128xf32>
    %14 = vector.broadcast %cst_7 : f32 to vector<160x128xf32>
    %15 = arith.minimumf %14, %13 : vector<160x128xf32>
    %16 = vector.shape_cast %15 : vector<160x128xf32> to vector<10x16x128xf32>
    %c0_8 = arith.constant 0 : index
    %c1 = arith.constant 1 : index
    %c0_9 = arith.constant 0 : index
    %17 = vector.load %arg10[%c0_8, %c1, %c0_9] : memref<10x18x128xf32, #tpu.memory_space<vmem>>, vector<10x16x128xf32>
    tpu.vector_store %arg10[%c0_8, %c1, %c0_9], %16 {strides = array<i32>} : memref<10x18x128xf32, #tpu.memory_space<vmem>>, vector<10x16x128xf32>,
    %cst_10 = arith.constant 0.000000e+00 : f32
    %18 = vector.broadcast %cst_10 : f32 to vector<10x1x128xf32>
    %c0_11 = arith.constant 0 : index
    %c0_12 = arith.constant 0 : index
    %c0_13 = arith.constant 0 : index
    %19 = vector.load %arg10[%c0_11, %c0_12, %c0_13] : memref<10x18x128xf32, #tpu.memory_space<vmem>>, vector<10x1x128xf32>
    tpu.vector_store %arg10[%c0_11, %c0_12, %c0_13], %18 {strides = array<i32>} : memref<10x18x128xf32, #tpu.memory_space<vmem>>, vector<10x1x128xf32>,
    %c0_14 = arith.constant 0 : index
    %c17 = arith.constant 17 : index
    %c0_15 = arith.constant 0 : index
    %20 = vector.load %arg10[%c0_14, %c17, %c0_15] : memref<10x18x128xf32, #tpu.memory_space<vmem>>, vector<10x1x128xf32>
    tpu.vector_store %arg10[%c0_14, %c17, %c0_15], %18 {strides = array<i32>} : memref<10x18x128xf32, #tpu.memory_space<vmem>>, vector<10x1x128xf32>,
    %cst_16 = arith.constant 0.000000e+00 : f32
    %21 = vector.broadcast %cst_16 : f32 to vector<1x18x128xf32>
    %c0_i32 = arith.constant 0 : i32
    %22 = arith.cmpi eq, %arg1, %c0_i32 : i32
    %23 = arith.extui %22 : i1 to i32
    %c0_i32_17 = arith.constant 0 : i32
    %24 = arith.cmpi ne, %23, %c0_i32_17 : i32
    scf.if %24 {
      %c0_71 = arith.constant 0 : index
      %c0_72 = arith.constant 0 : index
      %c0_73 = arith.constant 0 : index
      %113 = vector.load %arg10[%c0_71, %c0_72, %c0_73] : memref<10x18x128xf32, #tpu.memory_space<vmem>>, vector<1x18x128xf32>
      tpu.vector_store %arg10[%c0_71, %c0_72, %c0_73], %21 {strides = array<i32>} : memref<10x18x128xf32, #tpu.memory_space<vmem>>, vector<1x18x128xf32>,
    } else {
    }
    %c1_i32 = arith.constant 1 : i32
    %25 = arith.cmpi eq, %arg1, %c1_i32 : i32
    %26 = arith.extui %25 : i1 to i32
    %c0_i32_18 = arith.constant 0 : i32
    %27 = arith.cmpi ne, %26, %c0_i32_18 : i32
    scf.if %27 {
      %c9 = arith.constant 9 : index
      %c0_71 = arith.constant 0 : index
      %c0_72 = arith.constant 0 : index
      %113 = vector.load %arg10[%c9, %c0_71, %c0_72] : memref<10x18x128xf32, #tpu.memory_space<vmem>>, vector<1x18x128xf32>
      tpu.vector_store %arg10[%c9, %c0_71, %c0_72], %21 {strides = array<i32>} : memref<10x18x128xf32, #tpu.memory_space<vmem>>, vector<1x18x128xf32>,
    } else {
    }
    %cst_19 = arith.constant 0.000000e+00 : f32
    %28 = vector.broadcast %cst_19 : f32 to vector<8x16x128xf32>
    %c0_20 = arith.constant 0 : index
    %c0_21 = arith.constant 0 : index
    %c0_22 = arith.constant 0 : index
    %29 = vector.load %arg10[%c0_20, %c0_21, %c0_22] : memref<10x18x128xf32, #tpu.memory_space<vmem>>, vector<8x16x128xf32>
    %c0_23 = arith.constant 0 : index
    %c0_24 = arith.constant 0 : index
    %30 = vector.load %arg5[%c0_23, %c0_24] : memref<9x128xf32, #tpu.memory_space<vmem>>, vector<1x128xf32>
    %31 = vector.shape_cast %30 : vector<1x128xf32> to vector<128xf32>
    %32 = vector.shape_cast %31 : vector<128xf32> to vector<1x1x128xf32>
    %33 = vector.broadcast %32 : vector<1x1x128xf32> to vector<8x16x128xf32>
    %34 = arith.mulf %29, %33 : vector<8x16x128xf32>
    %35 = arith.addf %28, %34 : vector<8x16x128xf32>
    %c0_25 = arith.constant 0 : index
    %c1_26 = arith.constant 1 : index
    %c0_27 = arith.constant 0 : index
    %36 = vector.load %arg10[%c0_25, %c1_26, %c0_27] : memref<10x18x128xf32, #tpu.memory_space<vmem>>, vector<8x16x128xf32>
    %c1_28 = arith.constant 1 : index
    %c0_29 = arith.constant 0 : index
    %37 = vector.load %arg5[%c1_28, %c0_29] : memref<9x128xf32, #tpu.memory_space<vmem>>, vector<1x128xf32>
    %38 = vector.shape_cast %37 : vector<1x128xf32> to vector<128xf32>
    %39 = vector.shape_cast %38 : vector<128xf32> to vector<1x1x128xf32>
    %40 = vector.broadcast %39 : vector<1x1x128xf32> to vector<8x16x128xf32>
    %41 = arith.mulf %36, %40 : vector<8x16x128xf32>
    %42 = arith.addf %35, %41 : vector<8x16x128xf32>
    %c0_30 = arith.constant 0 : index
    %c2 = arith.constant 2 : index
    %c0_31 = arith.constant 0 : index
    %43 = vector.load %arg10[%c0_30, %c2, %c0_31] : memref<10x18x128xf32, #tpu.memory_space<vmem>>, vector<8x16x128xf32>
    %c2_32 = arith.constant 2 : index
    %c0_33 = arith.constant 0 : index
    %44 = vector.load %arg5[%c2_32, %c0_33] : memref<9x128xf32, #tpu.memory_space<vmem>>, vector<1x128xf32>
    %45 = vector.shape_cast %44 : vector<1x128xf32> to vector<128xf32>
    %46 = vector.shape_cast %45 : vector<128xf32> to vector<1x1x128xf32>
    %47 = vector.broadcast %46 : vector<1x1x128xf32> to vector<8x16x128xf32>
    %48 = arith.mulf %43, %47 : vector<8x16x128xf32>
    %49 = arith.addf %42, %48 : vector<8x16x128xf32>
    %c1_34 = arith.constant 1 : index
    %c0_35 = arith.constant 0 : index
    %c0_36 = arith.constant 0 : index
    %50 = vector.load %arg10[%c1_34, %c0_35, %c0_36] : memref<10x18x128xf32, #tpu.memory_space<vmem>>, vector<8x16x128xf32>
    %c3 = arith.constant 3 : index
    %c0_37 = arith.constant 0 : index
    %51 = vector.load %arg5[%c3, %c0_37] : memref<9x128xf32, #tpu.memory_space<vmem>>, vector<1x128xf32>
    %52 = vector.shape_cast %51 : vector<1x128xf32> to vector<128xf32>
    %53 = vector.shape_cast %52 : vector<128xf32> to vector<1x1x128xf32>
    %54 = vector.broadcast %53 : vector<1x1x128xf32> to vector<8x16x128xf32>
    %55 = arith.mulf %50, %54 : vector<8x16x128xf32>
    %56 = arith.addf %49, %55 : vector<8x16x128xf32>
    %c1_38 = arith.constant 1 : index
    %c1_39 = arith.constant 1 : index
    %c0_40 = arith.constant 0 : index
    %57 = vector.load %arg10[%c1_38, %c1_39, %c0_40] : memref<10x18x128xf32, #tpu.memory_space<vmem>>, vector<8x16x128xf32>
    %c4 = arith.constant 4 : index
    %c0_41 = arith.constant 0 : index
    %58 = vector.load %arg5[%c4, %c0_41] : memref<9x128xf32, #tpu.memory_space<vmem>>, vector<1x128xf32>
    %59 = vector.shape_cast %58 : vector<1x128xf32> to vector<128xf32>
    %60 = vector.shape_cast %59 : vector<128xf32> to vector<1x1x128xf32>
    %61 = vector.broadcast %60 : vector<1x1x128xf32> to vector<8x16x128xf32>
    %62 = arith.mulf %57, %61 : vector<8x16x128xf32>
    %63 = arith.addf %56, %62 : vector<8x16x128xf32>
    %c1_42 = arith.constant 1 : index
    %c2_43 = arith.constant 2 : index
    %c0_44 = arith.constant 0 : index
    %64 = vector.load %arg10[%c1_42, %c2_43, %c0_44] : memref<10x18x128xf32, #tpu.memory_space<vmem>>, vector<8x16x128xf32>
    %c5 = arith.constant 5 : index
    %c0_45 = arith.constant 0 : index
    %65 = vector.load %arg5[%c5, %c0_45] : memref<9x128xf32, #tpu.memory_space<vmem>>, vector<1x128xf32>
    %66 = vector.shape_cast %65 : vector<1x128xf32> to vector<128xf32>
    %67 = vector.shape_cast %66 : vector<128xf32> to vector<1x1x128xf32>
    %68 = vector.broadcast %67 : vector<1x1x128xf32> to vector<8x16x128xf32>
    %69 = arith.mulf %64, %68 : vector<8x16x128xf32>
    %70 = arith.addf %63, %69 : vector<8x16x128xf32>
    %c2_46 = arith.constant 2 : index
    %c0_47 = arith.constant 0 : index
    %c0_48 = arith.constant 0 : index
    %71 = vector.load %arg10[%c2_46, %c0_47, %c0_48] : memref<10x18x128xf32, #tpu.memory_space<vmem>>, vector<8x16x128xf32>
    %c6 = arith.constant 6 : index
    %c0_49 = arith.constant 0 : index
    %72 = vector.load %arg5[%c6, %c0_49] : memref<9x128xf32, #tpu.memory_space<vmem>>, vector<1x128xf32>
    %73 = vector.shape_cast %72 : vector<1x128xf32> to vector<128xf32>
    %74 = vector.shape_cast %73 : vector<128xf32> to vector<1x1x128xf32>
    %75 = vector.broadcast %74 : vector<1x1x128xf32> to vector<8x16x128xf32>
    %76 = arith.mulf %71, %75 : vector<8x16x128xf32>
    %77 = arith.addf %70, %76 : vector<8x16x128xf32>
    %c2_50 = arith.constant 2 : index
    %c1_51 = arith.constant 1 : index
    %c0_52 = arith.constant 0 : index
    %78 = vector.load %arg10[%c2_50, %c1_51, %c0_52] : memref<10x18x128xf32, #tpu.memory_space<vmem>>, vector<8x16x128xf32>
    %c7 = arith.constant 7 : index
    %c0_53 = arith.constant 0 : index
    %79 = vector.load %arg5[%c7, %c0_53] : memref<9x128xf32, #tpu.memory_space<vmem>>, vector<1x128xf32>
    %80 = vector.shape_cast %79 : vector<1x128xf32> to vector<128xf32>
    %81 = vector.shape_cast %80 : vector<128xf32> to vector<1x1x128xf32>
    %82 = vector.broadcast %81 : vector<1x1x128xf32> to vector<8x16x128xf32>
    %83 = arith.mulf %78, %82 : vector<8x16x128xf32>
    %84 = arith.addf %77, %83 : vector<8x16x128xf32>
    %c2_54 = arith.constant 2 : index
    %c2_55 = arith.constant 2 : index
    %c0_56 = arith.constant 0 : index
    %85 = vector.load %arg10[%c2_54, %c2_55, %c0_56] : memref<10x18x128xf32, #tpu.memory_space<vmem>>, vector<8x16x128xf32>
    %c8 = arith.constant 8 : index
    %c0_57 = arith.constant 0 : index
    %86 = vector.load %arg5[%c8, %c0_57] : memref<9x128xf32, #tpu.memory_space<vmem>>, vector<1x128xf32>
    %87 = vector.shape_cast %86 : vector<1x128xf32> to vector<128xf32>
    %88 = vector.shape_cast %87 : vector<128xf32> to vector<1x1x128xf32>
    %89 = vector.broadcast %88 : vector<1x1x128xf32> to vector<8x16x128xf32>
    %90 = arith.mulf %85, %89 : vector<8x16x128xf32>
    %91 = arith.addf %84, %90 : vector<8x16x128xf32>
    %c0_58 = arith.constant 0 : index
    %c0_59 = arith.constant 0 : index
    %92 = vector.load %arg6[%c0_58, %c0_59] : memref<1x128xf32, #tpu.memory_space<vmem>>, vector<1x128xf32>
    %93 = vector.shape_cast %92 : vector<1x128xf32> to vector<1x1x128xf32>
    %94 = vector.broadcast %93 : vector<1x1x128xf32> to vector<8x16x128xf32>
    %95 = arith.addf %91, %94 : vector<8x16x128xf32>
    %cst_60 = arith.constant 0.000000e+00 : f32
    %cst_61 = arith.constant 6.000000e+00 : f32
    %96 = vector.broadcast %cst_60 : f32 to vector<8x16x128xf32>
    %97 = arith.maximumf %96, %95 : vector<8x16x128xf32>
    %98 = vector.broadcast %cst_61 : f32 to vector<8x16x128xf32>
    %99 = arith.minimumf %98, %97 : vector<8x16x128xf32>
    %100 = vector.shape_cast %99 : vector<8x16x128xf32> to vector<128x128xf32>
    %101 = arith.truncf %100 : vector<128x128xf32> to vector<128x128xbf16>
    %c0_62 = arith.constant 0 : index
    %c0_63 = arith.constant 0 : index
    %102 = vector.load %arg7[%c0_62, %c0_63] : memref<128x4xbf16, #tpu.memory_space<vmem>>, vector<128x4xbf16>
    %cst_64 = arith.constant dense<0.000000e+00> : vector<128x4xf32>
    %103 = tpu.matmul %101, %102, %cst_64 {dimension_numbers = #tpu.dot_dimension_numbers<[1], [0], [0], [1], [0, 0, 1, 1], [], []>} : vector<128x128xbf16>, vector<128x4xbf16>, vector<128x4xf32> -> vector<128x4xf32>
    %c0_65 = arith.constant 0 : index
    %c0_66 = arith.constant 0 : index
    %104 = vector.load %arg8[%c0_65, %c0_66] : memref<1x4xf32, #tpu.memory_space<vmem>>, vector<1x4xf32>
    %105 = vector.broadcast %104 : vector<1x4xf32> to vector<128x4xf32>
    %106 = arith.addf %103, %105 : vector<128x4xf32>
    %107 = vector.shape_cast %106 : vector<128x4xf32> to vector<8x16x4xf32>
    %108 = vector.extract_strided_slice %4 {offsets = [1, 0, 0], sizes = [8, 16, 4], strides = [1, 1, 1]} : vector<10x16x4xf32> to vector<8x16x4xf32>
    %109 = arith.addf %107, %108 : vector<8x16x4xf32>
    %c0_67 = arith.constant 0 : index
    %c0_68 = arith.constant 0 : index
    %c0_69 = arith.constant 0 : index
    %c0_70 = arith.constant 0 : index
    %110 = vector.load %arg9[%c0_67, %c0_68, %c0_69, %c0_70] : memref<1x8x16x4xf32, #tpu.memory_space<vmem>>, vector<1x8x16x4xf32>
    %111 = vector.shape_cast %110 : vector<1x8x16x4xf32> to vector<8x16x4xf32>
    %112 = vector.shape_cast %109 : vector<8x16x4xf32> to vector<1x8x16x4xf32>
    tpu.vector_store %arg9[%c0_67, %c0_68, %c0_69, %c0_70], %112 {strides = array<i32>} : memref<1x8x16x4xf32, #tpu.memory_space<vmem>>, vector<1x8x16x4xf32>,
    return
  }
  func.func @transform_0(%arg0: i32, %arg1: i32) -> (i32, i32, i32, i32) {
    %c0_i32 = arith.constant 0 : i32
    %c0_i32_0 = arith.constant 0 : i32
    %c0_i32_1 = arith.constant 0 : i32
    %c0_i32_2 = arith.constant 0 : i32
    return %arg0, %c0_i32, %c0_i32_0, %c0_i32_1 : i32, i32, i32, i32
  }
  func.func @transform_1(%arg0: i32, %arg1: i32) -> (i32, i32) {
    %c0_i32 = arith.constant 0 : i32
    %c0_i32_0 = arith.constant 0 : i32
    %c0_i32_1 = arith.constant 0 : i32
    return %c0_i32, %c0_i32_0 : i32, i32
  }
  func.func @transform_2(%arg0: i32, %arg1: i32) -> (i32, i32) {
    %c0_i32 = arith.constant 0 : i32
    %c0_i32_0 = arith.constant 0 : i32
    %c0_i32_1 = arith.constant 0 : i32
    return %c0_i32, %c0_i32_0 : i32, i32
  }
  func.func @transform_3(%arg0: i32, %arg1: i32) -> (i32, i32) {
    %c0_i32 = arith.constant 0 : i32
    %c0_i32_0 = arith.constant 0 : i32
    %c0_i32_1 = arith.constant 0 : i32
    return %c0_i32, %c0_i32_0 : i32, i32
  }
  func.func @transform_4(%arg0: i32, %arg1: i32) -> (i32, i32) {
    %c0_i32 = arith.constant 0 : i32
    %c0_i32_0 = arith.constant 0 : i32
    %c0_i32_1 = arith.constant 0 : i32
    return %c0_i32, %c0_i32_0 : i32, i32
  }
  func.func @transform_5(%arg0: i32, %arg1: i32) -> (i32, i32) {
    %c0_i32 = arith.constant 0 : i32
    %c0_i32_0 = arith.constant 0 : i32
    %c0_i32_1 = arith.constant 0 : i32
    return %c0_i32, %c0_i32_0 : i32, i32
  }
  func.func @transform_6(%arg0: i32, %arg1: i32) -> (i32, i32) {
    %c0_i32 = arith.constant 0 : i32
    %c0_i32_0 = arith.constant 0 : i32
    %c0_i32_1 = arith.constant 0 : i32
    return %c0_i32, %c0_i32_0 : i32, i32
  }
  func.func @transform_7(%arg0: i32, %arg1: i32) -> (i32, i32, i32, i32) {
    %c0_i32 = arith.constant 0 : i32
    %c0_i32_0 = arith.constant 0 : i32
    %c0_i32_1 = arith.constant 0 : i32
    return %arg0, %arg1, %c0_i32, %c0_i32_0 : i32, i32, i32, i32
  }
}

</mosaic_0001>

<llo_original>
// kernel: inverted_residual.1
$region0: #{inverted_residual.1}
  #allocation0 [shape = 'u32[]', space=smem, size = 0x4, offset = 0x4, fixed_abs, tag = 'smem constant byte address 0x4 - core index']
  #allocation1 [shape = 'u32[72,128]{1,0:T(1,128)}', space=vmem, size = 0x9000, scoped, tag = 'internal scratch']
  #allocation2 [shape = 'f32[10,18,128]{2,1,0:T(8,128)}', space=vmem, size = 0x1e000, scoped, tag = 'scratch operand']
  %s0 = inlined_call_operand.vmem [shape: f32[2,18,16,4], index: 0, kind: input, shape index: {}]
  %s1 = inlined_call_operand.vmem [shape: bf16[4,128], index: 1, kind: input, shape index: {}]
  %s2 = inlined_call_operand.vmem [shape: f32[1,128], index: 2, kind: input, shape index: {}]
  %s3 = inlined_call_operand.vmem [shape: f32[9,128], index: 3, kind: input, shape index: {}]
  %s4 = inlined_call_operand.vmem [shape: f32[1,128], index: 4, kind: input, shape index: {}]
  %s5 = inlined_call_operand.vmem [shape: bf16[128,4], index: 5, kind: input, shape index: {}]
  %s6 = inlined_call_operand.vmem [shape: f32[1,4], index: 6, kind: input, shape index: {}]
  %s7 = inlined_call_operand.vmem [shape: f32[2,16,16,4], index: 7, kind: output, shape index: {}]
  %s8 = sld [smem:[#allocation0]]
  $region69: #{inverted_residual.1} parent=0
    _
  %s10 = ssub.s32 1, %s8
  %s11 = scalar_select 0, %s10, %s8
  loop: start=0, step=1, limit=6
  $region2: #{inverted_residual.1} parent=0 // loop_pre_header
    _
  $region3: #{inverted_residual.1} parent=0 // loop_header
    %s13 = sphi 0, %s17
    %p14 = scmp.ge.s32.totalorder %s13, 6
    %s20 = sphi 0, %s32
    %s21 = sphi 0, %s28
    %s22 = sphi 0, %s20
    %s23 = sphi 0, %s21
    %s24 = sphi 0, %s22
    %s25 = sphi 0, %s23
    %s35 = sphi 0, %s37
    %s38 = sphi 0, %s35
    %s39 = sphi 0, %s38
    %s55 = sphi 0, %s39
    %s59 = sphi 0, %s59
    %s61 = sphi 0, %s59
    %s62 = sphi 0, %s61
    %s76 = sphi 0, %s62
    %s80 = sphi 0, %s80
    %s82 = sphi 0, %s80
    %s83 = sphi 0, %s82
    %s97 = sphi 0, %s83
    %s101 = sphi 0, %s101
    %s103 = sphi 0, %s101
    %s104 = sphi 0, %s103
    %s118 = sphi 0, %s104
    %s122 = sphi 0, %s122
    %s124 = sphi 0, %s122
    %s125 = sphi 0, %s124
    %s139 = sphi 0, %s125
    %s143 = sphi 0, %s143
    %s145 = sphi 0, %s143
    %s146 = sphi 0, %s145
    %s160 = sphi 0, %s146
    %s164 = sphi 0, %s164
    %s166 = sphi 0, %s164
    %s167 = sphi 0, %s166
    %s181 = sphi 0, %s167
    %s189 = sphi 0, %s191
    %s192 = sphi 0, %s189
    %s193 = sphi 0, %s192
    %s209 = sphi 0, %s193
  $region4: #{inverted_residual.1} parent=0 // loop_header_branch
    %16 = sbr.rel (%p14) target = $region8
  $region5: #{inverted_residual.1} parent=0 // loop_body
    %s18 = ssub.s32 %s13, 1
    %s19 = ssub.s32 %s13, 2
    %s26 = sadd.s32 1, %s21
    %p27 = scmp.ge.s32.totalorder %s26, 2
    %s28 = scalar_select %p27, 0, %s26
    %s29 = sadd.s32 1, %s20
    %s30 = scalar_select %p27, %s29, %s20
    %p31 = scmp.ge.s32.totalorder %s30, 2
    %s32 = scalar_select %p31, 0, %s30
    %s33 = ssub.s32 %s20, %s32
    %p34 = scmp.eq.s32.totalorder %s33, 0
    %s36 = sadd.s32 %s35, 1
    %s37 = scalar_select %p34, %s35, %s36
    %p40 = pneg %p34
    %p41 = scmp.eq.s32.totalorder %s13, 3
    %p42 = por %p40, %p41
    %p43 = scmp.ne.s32.totalorder %s35, %s38
    %p44 = scmp.eq.s32.totalorder %s13, 0
    %p45 = por %p43, %p44
    %p46 = scmp.ne.s32.totalorder %s35, %s38
    %p47 = scmp.eq.s32.totalorder %s18, 3
    %p48 = por %p46, %p47
    %p49 = scmp.ne.s32.totalorder %s38, %s39
    %p50 = scmp.eq.s32.totalorder %s18, 0
    %p51 = por %p49, %p50
    %p52 = scmp.ne.s32.totalorder %s38, %s39
    %p53 = scmp.eq.s32.totalorder %s19, 3
    %p54 = por %p52, %p53
    %p56 = scmp.ne.s32.totalorder %s39, %s55
    %p57 = scmp.eq.s32.totalorder %s19, 0
    %p58 = por %p56, %p57
    %s60 = sadd.s32 %s59, 1
    %p63 = scmp.eq.s32.totalorder %s13, 3
    %p64 = scmp.ne.s32.totalorder %s59, %s61
    %p65 = scmp.eq.s32.totalorder %s13, 0
    %p66 = por %p64, %p65
    %p67 = scmp.ne.s32.totalorder %s59, %s61
    %p68 = scmp.eq.s32.totalorder %s18, 3
    %p69 = por %p67, %p68
    %p70 = scmp.ne.s32.totalorder %s61, %s62
    %p71 = scmp.eq.s32.totalorder %s18, 0
    %p72 = por %p70, %p71
    %p73 = scmp.ne.s32.totalorder %s61, %s62
    %p74 = scmp.eq.s32.totalorder %s19, 3
    %p75 = por %p73, %p74
    %p77 = scmp.ne.s32.totalorder %s62, %s76
    %p78 = scmp.eq.s32.totalorder %s19, 0
    %p79 = por %p77, %p78
    %s81 = sadd.s32 %s80, 1
    %p84 = scmp.eq.s32.totalorder %s13, 3
    %p85 = scmp.ne.s32.totalorder %s80, %s82
    %p86 = scmp.eq.s32.totalorder %s13, 0
    %p87 = por %p85, %p86
    %p88 = scmp.ne.s32.totalorder %s80, %s82
    %p89 = scmp.eq.s32.totalorder %s18, 3
    %p90 = por %p88, %p89
    %p91 = scmp.ne.s32.totalorder %s82, %s83
    %p92 = scmp.eq.s32.totalorder %s18, 0
    %p93 = por %p91, %p92
    %p94 = scmp.ne.s32.totalorder %s82, %s83
    %p95 = scmp.eq.s32.totalorder %s19, 3
    %p96 = por %p94, %p95
    %p98 = scmp.ne.s32.totalorder %s83, %s97
    %p99 = scmp.eq.s32.totalorder %s19, 0
    %p100 = por %p98, %p99
    %s102 = sadd.s32 %s101, 1
    %p105 = scmp.eq.s32.totalorder %s13, 3
    %p106 = scmp.ne.s32.totalorder %s101, %s103
    %p107 = scmp.eq.s32.totalorder %s13, 0
    %p108 = por %p106, %p107
    %p109 = scmp.ne.s32.totalorder %s101, %s103
    %p110 = scmp.eq.s32.totalorder %s18, 3
    %p111 = por %p109, %p110
    %p112 = scmp.ne.s32.totalorder %s103, %s104
    %p113 = scmp.eq.s32.totalorder %s18, 0
    %p114 = por %p112, %p113
    %p115 = scmp.ne.s32.totalorder %s103, %s104
    %p116 = scmp.eq.s32.totalorder %s19, 3
    %p117 = por %p115, %p116
    %p119 = scmp.ne.s32.totalorder %s104, %s118
    %p120 = scmp.eq.s32.totalorder %s19, 0
    %p121 = por %p119, %p120
    %s123 = sadd.s32 %s122, 1
    %p126 = scmp.eq.s32.totalorder %s13, 3
    %p127 = scmp.ne.s32.totalorder %s122, %s124
    %p128 = scmp.eq.s32.totalorder %s13, 0
    %p129 = por %p127, %p128
    %p130 = scmp.ne.s32.totalorder %s122, %s124
    %p131 = scmp.eq.s32.totalorder %s18, 3
    %p132 = por %p130, %p131
    %p133 = scmp.ne.s32.totalorder %s124, %s125
    %p134 = scmp.eq.s32.totalorder %s18, 0
    %p135 = por %p133, %p134
    %p136 = scmp.ne.s32.totalorder %s124, %s125
    %p137 = scmp.eq.s32.totalorder %s19, 3
    %p138 = por %p136, %p137
    %p140 = scmp.ne.s32.totalorder %s125, %s139
    %p141 = scmp.eq.s32.totalorder %s19, 0
    %p142 = por %p140, %p141
    %s144 = sadd.s32 %s143, 1
    %p147 = scmp.eq.s32.totalorder %s13, 3
    %p148 = scmp.ne.s32.totalorder %s143, %s145
    %p149 = scmp.eq.s32.totalorder %s13, 0
    %p150 = por %p148, %p149
    %p151 = scmp.ne.s32.totalorder %s143, %s145
    %p152 = scmp.eq.s32.totalorder %s18, 3
    %p153 = por %p151, %p152
    %p154 = scmp.ne.s32.totalorder %s145, %s146
    %p155 = scmp.eq.s32.totalorder %s18, 0
    %p156 = por %p154, %p155
    %p157 = scmp.ne.s32.totalorder %s145, %s146
    %p158 = scmp.eq.s32.totalorder %s19, 3
    %p159 = por %p157, %p158
    %p161 = scmp.ne.s32.totalorder %s146, %s160
    %p162 = scmp.eq.s32.totalorder %s19, 0
    %p163 = por %p161, %p162
    %s165 = sadd.s32 %s164, 1
    %p168 = scmp.eq.s32.totalorder %s13, 3
    %p169 = scmp.ne.s32.totalorder %s164, %s166
    %p170 = scmp.eq.s32.totalorder %s13, 0
    %p171 = por %p169, %p170
    %p172 = scmp.ne.s32.totalorder %s164, %s166
    %p173 = scmp.eq.s32.totalorder %s18, 3
    %p174 = por %p172, %p173
    %p175 = scmp.ne.s32.totalorder %s166, %s167
    %p176 = scmp.eq.s32.totalorder %s18, 0
    %p177 = por %p175, %p176
    %p178 = scmp.ne.s32.totalorder %s166, %s167
    %p179 = scmp.eq.s32.totalorder %s19, 3
    %p180 = por %p178, %p179
    %p182 = scmp.ne.s32.totalorder %s167, %s181
    %p183 = scmp.eq.s32.totalorder %s19, 0
    %p184 = por %p182, %p183
    %s185 = ssub.s32 %s20, %s32
    %s186 = ssub.s32 %s21, %s28
    %s187 = sor.u32 %s185, %s186
    %p188 = scmp.eq.s32.totalorder %s187, 0
    %s190 = sadd.s32 %s189, 1
    %s191 = scalar_select %p188, %s189, %s190
    %p194 = pneg %p188
    %p195 = scmp.eq.s32.totalorder %s13, 3
    %p196 = por %p194, %p195
    %p197 = scmp.ne.s32.totalorder %s189, %s192
    %p198 = scmp.eq.s32.totalorder %s13, 0
    %p199 = por %p197, %p198
    %p200 = scmp.ne.s32.totalorder %s189, %s192
    %p201 = scmp.eq.s32.totalorder %s18, 3
    %p202 = por %p200, %p201
    %p203 = scmp.ne.s32.totalorder %s192, %s193
    %p204 = scmp.eq.s32.totalorder %s18, 0
    %p205 = por %p203, %p204
    %p206 = scmp.ne.s32.totalorder %s192, %s193
    %p207 = scmp.eq.s32.totalorder %s19, 3
    %p208 = por %p206, %p207
    %p210 = scmp.ne.s32.totalorder %s193, %s209
    %p211 = scmp.eq.s32.totalorder %s19, 0
    %p212 = por %p210, %p211
    %p213 = scmp.le.s32.totalorder 1, %s13
    %p214 = scmp.lt.s32.totalorder %s13, 5
    %p215 = pnand %p213, %p214
    %p216 = pneg %p215
    // Predicated region
    $region9: #{inverted_residual.1} parent=5 // pred_check
      _
    $region10: #{inverted_residual.1} parent=5 // pred_check_branch
      %218 = sbr.rel (%p215) target = $region12
    $region11: #{inverted_residual.1} parent=5 // pred_region
      %s219 = ssub.s32 %s13, 1
      // Predicated region
      $region13: #{inverted_residual.1} parent=11 // pred_check
        %p220 = pneg %p72
      $region14: #{inverted_residual.1} parent=11 // pred_check_branch
        %222 = sbr.rel (%p220) target = $region16
      $region15: #{inverted_residual.1} parent=11 // pred_region
        _
      $region16: #{inverted_residual.1} parent=11 // pred_fallthru
        _
      // Predicated region
      $region17: #{inverted_residual.1} parent=11 // pred_check
        %p223 = pneg %p93
      $region18: #{inverted_residual.1} parent=11 // pred_check_branch
        %225 = sbr.rel (%p223) target = $region20
      $region19: #{inverted_residual.1} parent=11 // pred_region
        _
      $region20: #{inverted_residual.1} parent=11 // pred_fallthru
        _
      // Predicated region
      $region21: #{inverted_residual.1} parent=11 // pred_check
        %p226 = pneg %p114
      $region22: #{inverted_residual.1} parent=11 // pred_check_branch
        %228 = sbr.rel (%p226) target = $region24
      $region23: #{inverted_residual.1} parent=11 // pred_region
        _
      $region24: #{inverted_residual.1} parent=11 // pred_fallthru
        _
      // Predicated region
      $region25: #{inverted_residual.1} parent=11 // pred_check
        %p229 = pneg %p135
      $region26: #{inverted_residual.1} parent=11 // pred_check_branch
        %231 = sbr.rel (%p229) target = $region28
      $region27: #{inverted_residual.1} parent=11 // pred_region
        _
      $region28: #{inverted_residual.1} parent=11 // pred_fallthru
        _
      // Predicated region
      $region29: #{inverted_residual.1} parent=11 // pred_check
        %p232 = pneg %p156
      $region30: #{inverted_residual.1} parent=11 // pred_check_branch
        %234 = sbr.rel (%p232) target = $region32
      $region31: #{inverted_residual.1} parent=11 // pred_region
        _
      $region32: #{inverted_residual.1} parent=11 // pred_fallthru
        _
      // Predicated region
      $region33: #{inverted_residual.1} parent=11 // pred_check
        %p235 = pneg %p177
      $region34: #{inverted_residual.1} parent=11 // pred_check_branch
        %237 = sbr.rel (%p235) target = $region36
      $region35: #{inverted_residual.1} parent=11 // pred_region
        _
      $region36: #{inverted_residual.1} parent=11 // pred_fallthru
        _
    $region12: #{inverted_residual.1} parent=5 // pred_fallthru
      _
    %p238 = scmp.lt.s32.totalorder %s13, 4
    // Predicated region
    $region37: #{inverted_residual.1} parent=5 // pred_check
      %p239 = pneg %p238
    $region38: #{inverted_residual.1} parent=5 // pred_check_branch
      %241 = sbr.rel (%p239) target = $region40
    $region39: #{inverted_residual.1} parent=5 // pred_region
      // Predicated region
      $region41: #{inverted_residual.1} parent=39 // pred_check
        %p242 = pneg %p45
      $region42: #{inverted_residual.1} parent=39 // pred_check_branch
        %244 = sbr.rel (%p242) target = $region44
      $region43: #{inverted_residual.1} parent=39 // pred_region
        %p245 = scmp.lt.s32.totalorder %s20, 1
        %s246 = scalar_select %p245, %s20, 1
        %s247 = smul.addr %s246, 36
        %s248 = smul.addr %s247, 8
        %s249 = scalar_lea.vmem %s0, %s248
      $region44: #{inverted_residual.1} parent=39 // pred_fallthru
        _
    $region40: #{inverted_residual.1} parent=5 // pred_fallthru
      _
    %p250 = scmp.le.s32.totalorder 1, %s13
    %p251 = scmp.lt.s32.totalorder %s13, 5
    %p252 = pnand %p250, %p251
    %p253 = pneg %p252
    // Predicated region
    $region45: #{inverted_residual.1} parent=5 // pred_check
      _
    $region46: #{inverted_residual.1} parent=5 // pred_check_branch
      %255 = sbr.rel (%p252) target = $region48
    $region47: #{inverted_residual.1} parent=5 // pred_region
      %s256 = ssub.s32 %s13, 1
      %p257 = scmp.lt.s32.totalorder %s22, 1
      %s258 = scalar_select %p257, %s22, 1
      %s259 = smul.addr %s258, 36
      %s260 = smul.addr %s259, 8
      %s261 = scalar_lea.vmem %s0, %s260
      %p262 = pneg %p51
      %p263 = pneg %p48
      %p264 = pneg %p72
      %p265 = pneg %p69
      %p266 = pneg %p93
      %p267 = pneg %p90
      %p268 = pneg %p114
      %p269 = pneg %p111
      %p270 = pneg %p135
      %p271 = pneg %p132
      %p272 = pneg %p156
      %p273 = pneg %p153
      %p274 = pneg %p177
      %p275 = pneg %p174
      %p276 = pneg %p205
      %p277 = pneg %p202
      %s278 = smul.u32 8, %s23
      %p279 = scmp.lt.s32.totalorder %s22, 1
      %s280 = scalar_select %p279, %s22, 1
      %p281 = scmp.lt.s32.totalorder %s278, 15
      %s282 = scalar_select %p281, %s278, 15
      %s283 = smul.addr %s282, 2
      %s284 = smul.addr %s280, 32
      %s285 = sadd.s32 %s283, %s284
      %s286 = smul.addr %s285, 8
      %s287 = scalar_lea.vmem %s7, %s286
      %p288 = scmp.lt.s32.totalorder %s22, 1
      %s289 = scalar_select %p288, %s22, 1
      %s290 = smul.addr %s289, 36
      %s291 = smul.addr %s290, 8
      %s292 = scalar_lea.vmem %s0, %s291
      %s293 = smul.u32 8, %s23
      %p294 = scmp.lt.s32.totalorder %s22, 1
      %s295 = scalar_select %p294, %s22, 1
      %p296 = scmp.lt.s32.totalorder %s293, 15
      %s297 = scalar_select %p296, %s293, 15
      %s298 = smul.addr %s297, 2
      %s299 = smul.addr %s295, 32
      %s300 = sadd.s32 %s298, %s299
      %s301 = smul.addr %s300, 8
      %s302 = scalar_lea.vmem %s7, %s301
      %s303 = smul.u32 8, %s23
      %s305 = smul.u32 %s23, 8
      %s306 = smul.u32 %s305, 16
      %s307 = scalar_lea.vmem %s292, %s306
      %v308 = vld [vmem:[%s307] sm:$0xff]
      %v309 = vld [vmem:[%s307 + $0x8] sm:$0xff]
      %v310 = vld [vmem:[%s307 + $0x10] sm:$0xff]
      %v311 = vld [vmem:[%s307 + $0x18] sm:$0xff]
      %v312 = vld [vmem:[%s307 + $0x20] sm:$0xff]
      %v313 = vld [vmem:[%s307 + $0x28] sm:$0xff]
      %v314 = vld [vmem:[%s307 + $0x30] sm:$0xff]
      %v315 = vld [vmem:[%s307 + $0x38] sm:$0xff]
      %v316 = vld [vmem:[%s307 + $0x40] sm:$0xff]
      %v317 = vld [vmem:[%s307 + $0x48] sm:$0xff]
      %v318 = vld [vmem:[%s307 + $0x50] sm:$0xff]
      %v319 = vld [vmem:[%s307 + $0x58] sm:$0xff]
      %v320 = vld [vmem:[%s307 + $0x60] sm:$0xff]
      %v321 = vld [vmem:[%s307 + $0x68] sm:$0xff]
      %v322 = vld [vmem:[%s307 + $0x70] sm:$0xff]
      %v323 = vld [vmem:[%s307 + $0x78] sm:$0xff]
      %v324 = vld [vmem:[%s307 + $0x80] sm:$0xff]
      %v325 = vld [vmem:[%s307 + $0x88] sm:$0xff]
      %v326 = vld [vmem:[%s307 + $0x90] sm:$0xff]
      %v327 = vld [vmem:[%s307 + $0x98] sm:$0xff]
      %v328 = vpack.c.bf16 %v309, %v308
      %v329 = vpack.c.bf16 %v311, %v310
      %v330 = vpack.c.bf16 %v313, %v312
      %v331 = vpack.c.bf16 %v315, %v314
      %v332 = vpack.c.bf16 %v317, %v316
      %v333 = vpack.c.bf16 %v319, %v318
      %v334 = vpack.c.bf16 %v321, %v320
      %v335 = vpack.c.bf16 %v323, %v322
      %v336 = vpack.c.bf16 %v325, %v324
      %v337 = vpack.c.bf16 %v327, %v326
      %v338 = vld [vmem:[%s1] sm:$0x3]
      %v339 = vld [vmem:[%s2] sm:$0x1]
      %v341 = vperm.slane %v339, 0
      %vm343 = vcmask 31744
      %v345 = vsel %vm343, %v328, 0
      %v348 = vsel %vm343, %v329, 0
      %v351 = vsel %vm343, %v330, 0
      %v354 = vsel %vm343, %v331, 0
      %v357 = vsel %vm343, %v332, 0
      %v360 = vsel %vm343, %v333, 0
      %v363 = vsel %vm343, %v334, 0
      %v366 = vsel %vm343, %v335, 0
      %v369 = vsel %vm343, %v336, 0
      %v372 = vsel %vm343, %v337, 0
      %vm374 = vcmask 1041408
      %v376 = vsel %vm374, %v338, 0
      %378 = vmatpush.bf16.msra.mxu0 0
      %379 = vmatpush.bf16.msra.mxu0 0
      %380 = vmatpush.bf16.msra.mxu0 0
      %381 = vmatpush.bf16.msra.mxu0 0
      %382 = vmatpush.bf16.msra.mxu0 0
      %383 = vmatpush.bf16.msra.mxu0 0
      %384 = vmatpush.bf16.msra.mxu0 0
      %385 = vmatpush.bf16.msra.mxu0 %v376
      %386 = vmatmul.bf16.gmra.mxu0 %v345
      %v387 = vpop.f32.mrf.mxu0
      %v388 = vadd.f32 %v341, %v387
      %v389 = vpop.f32.mrf.mxu0
      %v390 = vadd.f32 %v341, %v389
      %391 = vmatmul.bf16.gmra.mxu0 %v348
      %v392 = vpop.f32.mrf.mxu0
      %v393 = vadd.f32 %v341, %v392
      %v394 = vpop.f32.mrf.mxu0
      %v395 = vadd.f32 %v341, %v394
      %396 = vmatmul.bf16.gmra.mxu0 %v351
      %v397 = vpop.f32.mrf.mxu0
      %v398 = vadd.f32 %v341, %v397
      %v399 = vpop.f32.mrf.mxu0
      %v400 = vadd.f32 %v341, %v399
      %401 = vmatmul.bf16.gmra.mxu0 %v354
      %v402 = vpop.f32.mrf.mxu0
      %v403 = vadd.f32 %v341, %v402
      %v404 = vpop.f32.mrf.mxu0
      %v405 = vadd.f32 %v341, %v404
      %406 = vmatmul.bf16.gmra.mxu0 %v357
      %v407 = vpop.f32.mrf.mxu0
      %v408 = vadd.f32 %v341, %v407
      %v409 = vpop.f32.mrf.mxu0
      %v410 = vadd.f32 %v341, %v409
      %411 = vmatmul.bf16.gmra.mxu0 %v360
      %v412 = vpop.f32.mrf.mxu0
      %v413 = vadd.f32 %v341, %v412
      %v414 = vpop.f32.mrf.mxu0
      %v415 = vadd.f32 %v341, %v414
      %416 = vmatmul.bf16.gmra.mxu0 %v363
      %v417 = vpop.f32.mrf.mxu0
      %v418 = vadd.f32 %v341, %v417
      %v419 = vpop.f32.mrf.mxu0
      %v420 = vadd.f32 %v341, %v419
      %421 = vmatmul.bf16.gmra.mxu0 %v366
      %v422 = vpop.f32.mrf.mxu0
      %v423 = vadd.f32 %v341, %v422
      %v424 = vpop.f32.mrf.mxu0
      %v425 = vadd.f32 %v341, %v424
      %426 = vmatmul.bf16.gmra.mxu0 %v369
      %v427 = vpop.f32.mrf.mxu0
      %v428 = vadd.f32 %v341, %v427
      %v429 = vpop.f32.mrf.mxu0
      %v430 = vadd.f32 %v341, %v429
      %431 = vmatmul.bf16.gmra.mxu0 %v372
      %v432 = vpop.f32.mrf.mxu0
      %v433 = vadd.f32 %v341, %v432
      %v434 = vpop.f32.mrf.mxu0
      %v435 = vadd.f32 %v341, %v434
      %436 = vdwg.mxu0
      %v437 = vmax.f32 %v388, 0.0
      %v438 = vmax.f32 %v390, 0.0
      %v439 = vmax.f32 %v393, 0.0
      %v440 = vmax.f32 %v395, 0.0
      %v441 = vmax.f32 %v398, 0.0
      %v442 = vmax.f32 %v400, 0.0
      %v443 = vmax.f32 %v403, 0.0
      %v444 = vmax.f32 %v405, 0.0
      %v445 = vmax.f32 %v408, 0.0
      %v446 = vmax.f32 %v410, 0.0
      %v447 = vmax.f32 %v413, 0.0
      %v448 = vmax.f32 %v415, 0.0
      %v449 = vmax.f32 %v418, 0.0
      %v450 = vmax.f32 %v420, 0.0
      %v451 = vmax.f32 %v423, 0.0
      %v452 = vmax.f32 %v425, 0.0
      %v453 = vmax.f32 %v428, 0.0
      %v454 = vmax.f32 %v430, 0.0
      %v455 = vmax.f32 %v433, 0.0
      %v456 = vmax.f32 %v435, 0.0
      %v457 = vmin.f32 %v437, 6.0
      %v458 = vmin.f32 %v438, 6.0
      %v459 = vmin.f32 %v439, 6.0
      %v460 = vmin.f32 %v440, 6.0
      %v461 = vmin.f32 %v441, 6.0
      %v462 = vmin.f32 %v442, 6.0
      %v463 = vmin.f32 %v443, 6.0
      %v464 = vmin.f32 %v444, 6.0
      %v465 = vmin.f32 %v445, 6.0
      %v466 = vmin.f32 %v446, 6.0
      %v467 = vmin.f32 %v447, 6.0
      %v468 = vmin.f32 %v448, 6.0
      %v469 = vmin.f32 %v449, 6.0
      %v470 = vmin.f32 %v450, 6.0
      %v471 = vmin.f32 %v451, 6.0
      %v472 = vmin.f32 %v452, 6.0
      %v473 = vmin.f32 %v453, 6.0
      %v474 = vmin.f32 %v454, 6.0
      %v475 = vmin.f32 %v455, 6.0
      %v476 = vmin.f32 %v456, 6.0
      %477 = vst [vmem:[#allocation2 + $0x1] sm:$0xff] %v457
      %478 = vst [vmem:[#allocation2 + $0x9] sm:$0xff] %v458
      %479 = vst [vmem:[#allocation2 + $0x19] sm:$0xff] %v459
      %480 = vst [vmem:[#allocation2 + $0x21] sm:$0xff] %v460
      %481 = vst [vmem:[#allocation2 + $0x31] sm:$0xff] %v461
      %482 = vst [vmem:[#allocation2 + $0x39] sm:$0xff] %v462
      %483 = vst [vmem:[#allocation2 + $0x49] sm:$0xff] %v463
      %484 = vst [vmem:[#allocation2 + $0x51] sm:$0xff] %v464
      %485 = vst [vmem:[#allocation2 + $0x61] sm:$0xff] %v465
      %486 = vst [vmem:[#allocation2 + $0x69] sm:$0xff] %v466
      %487 = vst [vmem:[#allocation2 + $0x79] sm:$0xff] %v467
      %488 = vst [vmem:[#allocation2 + $0x81] sm:$0xff] %v468
      %489 = vst [vmem:[#allocation2 + $0x91] sm:$0xff] %v469
      %490 = vst [vmem:[#allocation2 + $0x99] sm:$0xff] %v470
      %491 = vst [vmem:[#allocation2 + $0xa9] sm:$0xff] %v471
      %492 = vst [vmem:[#allocation2 + $0xb1] sm:$0xff] %v472
      %493 = vst [vmem:[#allocation2 + $0xc1] sm:$0xff] %v473
      %494 = vst [vmem:[#allocation2 + $0xc9] sm:$0xff] %v474
      %495 = vst [vmem:[#allocation2 + $0xd9] sm:$0xff] %v475
      %496 = vst [vmem:[#allocation2 + $0xe1] sm:$0xff] %v476
      %497 = vst [vmem:[#allocation2] sm:$0x1] 0.0
      %498 = vst [vmem:[#allocation2 + $0x18] sm:$0x1] 0.0
      %499 = vst [vmem:[#allocation2 + $0x30] sm:$0x1] 0.0
      %500 = vst [vmem:[#allocation2 + $0x48] sm:$0x1] 0.0
      %501 = vst [vmem:[#allocation2 + $0x60] sm:$0x1] 0.0
      %502 = vst [vmem:[#allocation2 + $0x78] sm:$0x1] 0.0
      %503 = vst [vmem:[#allocation2 + $0x90] sm:$0x1] 0.0
      %504 = vst [vmem:[#allocation2 + $0xa8] sm:$0x1] 0.0
      %505 = vst [vmem:[#allocation2 + $0xc0] sm:$0x1] 0.0
      %506 = vst [vmem:[#allocation2 + $0xd8] sm:$0x1] 0.0
      %507 = vst [vmem:[#allocation2 + $0x11] sm:$0x1] 0.0
      %508 = vst [vmem:[#allocation2 + $0x29] sm:$0x1] 0.0
      %509 = vst [vmem:[#allocation2 + $0x41] sm:$0x1] 0.0
      %510 = vst [vmem:[#allocation2 + $0x59] sm:$0x1] 0.0
      %511 = vst [vmem:[#allocation2 + $0x71] sm:$0x1] 0.0
      %512 = vst [vmem:[#allocation2 + $0x89] sm:$0x1] 0.0
      %513 = vst [vmem:[#allocation2 + $0xa1] sm:$0x1] 0.0
      %514 = vst [vmem:[#allocation2 + $0xb9] sm:$0x1] 0.0
      %515 = vst [vmem:[#allocation2 + $0xd1] sm:$0x1] 0.0
      %516 = vst [vmem:[#allocation2 + $0xe9] sm:$0x1] 0.0
      %p517 = scmp.eq.s32.totalorder %s23, 0
      // Predicated region
      $region49: #{inverted_residual.1} parent=47 // pred_check
        %p518 = pneg %p517
      $region50: #{inverted_residual.1} parent=47 // pred_check_branch
        %520 = sbr.rel (%p518) target = $region52
      $region51: #{inverted_residual.1} parent=47 // pred_region
        %521 = vst [vmem:[#allocation2] sm:$0xff] 0.0
        %522 = vst [vmem:[#allocation2 + $0x8] sm:$0xff] 0.0
        %523 = vst [vmem:[#allocation2 + $0x10] sm:$0x3] 0.0
      $region52: #{inverted_residual.1} parent=47 // pred_fallthru
        _
      %p524 = scmp.eq.s32.totalorder %s23, 1
      // Predicated region
      $region53: #{inverted_residual.1} parent=47 // pred_check
        %p525 = pneg %p524
      $region54: #{inverted_residual.1} parent=47 // pred_check_branch
        %527 = sbr.rel (%p525) target = $region56
      $region55: #{inverted_residual.1} parent=47 // pred_region
        %s528 = scalar_lea.vmem [#allocation2], 216
        %529 = vst [vmem:[%s528] sm:$0xff] 0.0
        %530 = vst [vmem:[%s528 + $0x8] sm:$0xff] 0.0
        %531 = vst [vmem:[%s528 + $0x10] sm:$0x3] 0.0
      $region56: #{inverted_residual.1} parent=47 // pred_fallthru
        _
      %v532 = vld [vmem:[#allocation2] sm:$0xff]
      %v533 = vld [vmem:[#allocation2 + $0x8] sm:$0xff]
      %v534 = vld [vmem:[#allocation2 + $0x18] sm:$0xff]
      %v535 = vld [vmem:[#allocation2 + $0x20] sm:$0xff]
      %v536 = vld [vmem:[#allocation2 + $0x30] sm:$0xff]
      %v537 = vld [vmem:[#allocation2 + $0x38] sm:$0xff]
      %v538 = vld [vmem:[#allocation2 + $0x48] sm:$0xff]
      %v539 = vld [vmem:[#allocation2 + $0x50] sm:$0xff]
      %v540 = vld [vmem:[#allocation2 + $0x60] sm:$0xff]
      %v541 = vld [vmem:[#allocation2 + $0x68] sm:$0xff]
      %v542 = vld [vmem:[#allocation2 + $0x78] sm:$0xff]
      %v543 = vld [vmem:[#allocation2 + $0x80] sm:$0xff]
      %v544 = vld [vmem:[#allocation2 + $0x90] sm:$0xff]
      %v545 = vld [vmem:[#allocation2 + $0x98] sm:$0xff]
      %v546 = vld [vmem:[#allocation2 + $0xa8] sm:$0xff]
      %v547 = vld [vmem:[#allocation2 + $0xb0] sm:$0xff]
      %v548 = vld [vmem:[%s3] sm:$0x1]
      %v549 = vperm.slane %v548, 0
      %v550 = vmul.f32 %v532, %v549
      %v551 = vmul.f32 %v533, %v549
      %v552 = vmul.f32 %v534, %v549
      %v553 = vmul.f32 %v535, %v549
      %v554 = vmul.f32 %v536, %v549
      %v555 = vmul.f32 %v537, %v549
      %v556 = vmul.f32 %v538, %v549
      %v557 = vmul.f32 %v539, %v549
      %v558 = vmul.f32 %v540, %v549
      %v559 = vmul.f32 %v541, %v549
      %v560 = vmul.f32 %v542, %v549
      %v561 = vmul.f32 %v543, %v549
      %v562 = vmul.f32 %v544, %v549
      %v563 = vmul.f32 %v545, %v549
      %v564 = vmul.f32 %v546, %v549
      %v565 = vmul.f32 %v547, %v549
      %v566 = vadd.f32 %v550, 0.0
      %v567 = vadd.f32 %v551, 0.0
      %v568 = vadd.f32 %v552, 0.0
      %v569 = vadd.f32 %v553, 0.0
      %v570 = vadd.f32 %v554, 0.0
      %v571 = vadd.f32 %v555, 0.0
      %v572 = vadd.f32 %v556, 0.0
      %v573 = vadd.f32 %v557, 0.0
      %v574 = vadd.f32 %v558, 0.0
      %v575 = vadd.f32 %v559, 0.0
      %v576 = vadd.f32 %v560, 0.0
      %v577 = vadd.f32 %v561, 0.0
      %v578 = vadd.f32 %v562, 0.0
      %v579 = vadd.f32 %v563, 0.0
      %v580 = vadd.f32 %v564, 0.0
      %v581 = vadd.f32 %v565, 0.0
      %v582 = vld [vmem:[#allocation2 + $0x1] sm:$0xff]
      %v583 = vld [vmem:[#allocation2 + $0x9] sm:$0xff]
      %v584 = vld [vmem:[#allocation2 + $0x19] sm:$0xff]
      %v585 = vld [vmem:[#allocation2 + $0x21] sm:$0xff]
      %v586 = vld [vmem:[#allocation2 + $0x31] sm:$0xff]
      %v587 = vld [vmem:[#allocation2 + $0x39] sm:$0xff]
      %v588 = vld [vmem:[#allocation2 + $0x49] sm:$0xff]
      %v589 = vld [vmem:[#allocation2 + $0x51] sm:$0xff]
      %v590 = vld [vmem:[#allocation2 + $0x61] sm:$0xff]
      %v591 = vld [vmem:[#allocation2 + $0x69] sm:$0xff]
      %v592 = vld [vmem:[#allocation2 + $0x79] sm:$0xff]
      %v593 = vld [vmem:[#allocation2 + $0x81] sm:$0xff]
      %v594 = vld [vmem:[#allocation2 + $0x91] sm:$0xff]
      %v595 = vld [vmem:[#allocation2 + $0x99] sm:$0xff]
      %v596 = vld [vmem:[#allocation2 + $0xa9] sm:$0xff]
      %v597 = vld [vmem:[#allocation2 + $0xb1] sm:$0xff]
      %v598 = vld [vmem:[%s3 + $0x1] sm:$0x1]
      %v599 = vperm.slane %v598, 0
      %v600 = vmul.f32 %v582, %v599
      %v601 = vmul.f32 %v583, %v599
      %v602 = vmul.f32 %v584, %v599
      %v603 = vmul.f32 %v585, %v599
      %v604 = vmul.f32 %v586, %v599
      %v605 = vmul.f32 %v587, %v599
      %v606 = vmul.f32 %v588, %v599
      %v607 = vmul.f32 %v589, %v599
      %v608 = vmul.f32 %v590, %v599
      %v609 = vmul.f32 %v591, %v599
      %v610 = vmul.f32 %v592, %v599
      %v611 = vmul.f32 %v593, %v599
      %v612 = vmul.f32 %v594, %v599
      %v613 = vmul.f32 %v595, %v599
      %v614 = vmul.f32 %v596, %v599
      %v615 = vmul.f32 %v597, %v599
      %v616 = vadd.f32 %v566, %v600
      %v617 = vadd.f32 %v567, %v601
      %v618 = vadd.f32 %v568, %v602
      %v619 = vadd.f32 %v569, %v603
      %v620 = vadd.f32 %v570, %v604
      %v621 = vadd.f32 %v571, %v605
      %v622 = vadd.f32 %v572, %v606
      %v623 = vadd.f32 %v573, %v607
      %v624 = vadd.f32 %v574, %v608
      %v625 = vadd.f32 %v575, %v609
      %v626 = vadd.f32 %v576, %v610
      %v627 = vadd.f32 %v577, %v611
      %v628 = vadd.f32 %v578, %v612
      %v629 = vadd.f32 %v579, %v613
      %v630 = vadd.f32 %v580, %v614
      %v631 = vadd.f32 %v581, %v615
      %v632 = vld [vmem:[#allocation2 + $0x2] sm:$0xff]
      %v633 = vld [vmem:[#allocation2 + $0xa] sm:$0xff]
      %v634 = vld [vmem:[#allocation2 + $0x1a] sm:$0xff]
      %v635 = vld [vmem:[#allocation2 + $0x22] sm:$0xff]
      %v636 = vld [vmem:[#allocation2 + $0x32] sm:$0xff]
      %v637 = vld [vmem:[#allocation2 + $0x3a] sm:$0xff]
      %v638 = vld [vmem:[#allocation2 + $0x4a] sm:$0xff]
      %v639 = vld [vmem:[#allocation2 + $0x52] sm:$0xff]
      %v640 = vld [vmem:[#allocation2 + $0x62] sm:$0xff]
      %v641 = vld [vmem:[#allocation2 + $0x6a] sm:$0xff]
      %v642 = vld [vmem:[#allocation2 + $0x7a] sm:$0xff]
      %v643 = vld [vmem:[#allocation2 + $0x82] sm:$0xff]
      %v644 = vld [vmem:[#allocation2 + $0x92] sm:$0xff]
      %v645 = vld [vmem:[#allocation2 + $0x9a] sm:$0xff]
      %v646 = vld [vmem:[#allocation2 + $0xaa] sm:$0xff]
      %v647 = vld [vmem:[#allocation2 + $0xb2] sm:$0xff]
      %v648 = vld [vmem:[%s3 + $0x2] sm:$0x1]
      %v649 = vperm.slane %v648, 0
      %v650 = vmul.f32 %v632, %v649
      %v651 = vmul.f32 %v633, %v649
      %v652 = vmul.f32 %v634, %v649
      %v653 = vmul.f32 %v635, %v649
      %v654 = vmul.f32 %v636, %v649
      %v655 = vmul.f32 %v637, %v649
      %v656 = vmul.f32 %v638, %v649
      %v657 = vmul.f32 %v639, %v649
      %v658 = vmul.f32 %v640, %v649
      %v659 = vmul.f32 %v641, %v649
      %v660 = vmul.f32 %v642, %v649
      %v661 = vmul.f32 %v643, %v649
      %v662 = vmul.f32 %v644, %v649
      %v663 = vmul.f32 %v645, %v649
      %v664 = vmul.f32 %v646, %v649
      %v665 = vmul.f32 %v647, %v649
      %v666 = vadd.f32 %v616, %v650
      %v667 = vadd.f32 %v617, %v651
      %v668 = vadd.f32 %v618, %v652
      %v669 = vadd.f32 %v619, %v653
      %v670 = vadd.f32 %v620, %v654
      %v671 = vadd.f32 %v621, %v655
      %v672 = vadd.f32 %v622, %v656
      %v673 = vadd.f32 %v623, %v657
      %v674 = vadd.f32 %v624, %v658
      %v675 = vadd.f32 %v625, %v659
      %v676 = vadd.f32 %v626, %v660
      %v677 = vadd.f32 %v627, %v661
      %v678 = vadd.f32 %v628, %v662
      %v679 = vadd.f32 %v629, %v663
      %v680 = vadd.f32 %v630, %v664
      %v681 = vadd.f32 %v631, %v665
      %s682 = scalar_lea.vmem [#allocation2], 24
      %v683 = vld [vmem:[%s682] sm:$0xff]
      %v684 = vld [vmem:[%s682 + $0x8] sm:$0xff]
      %v685 = vld [vmem:[%s682 + $0x18] sm:$0xff]
      %v686 = vld [vmem:[%s682 + $0x20] sm:$0xff]
      %v687 = vld [vmem:[%s682 + $0x30] sm:$0xff]
      %v688 = vld [vmem:[%s682 + $0x38] sm:$0xff]
      %v689 = vld [vmem:[%s682 + $0x48] sm:$0xff]
      %v690 = vld [vmem:[%s682 + $0x50] sm:$0xff]
      %v691 = vld [vmem:[%s682 + $0x60] sm:$0xff]
      %v692 = vld [vmem:[%s682 + $0x68] sm:$0xff]
      %v693 = vld [vmem:[%s682 + $0x78] sm:$0xff]
      %v694 = vld [vmem:[%s682 + $0x80] sm:$0xff]
      %v695 = vld [vmem:[%s682 + $0x90] sm:$0xff]
      %v696 = vld [vmem:[%s682 + $0x98] sm:$0xff]
      %v697 = vld [vmem:[%s682 + $0xa8] sm:$0xff]
      %v698 = vld [vmem:[%s682 + $0xb0] sm:$0xff]
      %v699 = vld [vmem:[%s3 + $0x3] sm:$0x1]
      %v700 = vperm.slane %v699, 0
      %v701 = vmul.f32 %v683, %v700
      %v702 = vmul.f32 %v684, %v700
      %v703 = vmul.f32 %v685, %v700
      %v704 = vmul.f32 %v686, %v700
      %v705 = vmul.f32 %v687, %v700
      %v706 = vmul.f32 %v688, %v700
      %v707 = vmul.f32 %v689, %v700
      %v708 = vmul.f32 %v690, %v700
      %v709 = vmul.f32 %v691, %v700
      %v710 = vmul.f32 %v692, %v700
      %v711 = vmul.f32 %v693, %v700
      %v712 = vmul.f32 %v694, %v700
      %v713 = vmul.f32 %v695, %v700
      %v714 = vmul.f32 %v696, %v700
      %v715 = vmul.f32 %v697, %v700
      %v716 = vmul.f32 %v698, %v700
      %v717 = vadd.f32 %v666, %v701
      %v718 = vadd.f32 %v667, %v702
      %v719 = vadd.f32 %v668, %v703
      %v720 = vadd.f32 %v669, %v704
      %v721 = vadd.f32 %v670, %v705
      %v722 = vadd.f32 %v671, %v706
      %v723 = vadd.f32 %v672, %v707
      %v724 = vadd.f32 %v673, %v708
      %v725 = vadd.f32 %v674, %v709
      %v726 = vadd.f32 %v675, %v710
      %v727 = vadd.f32 %v676, %v711
      %v728 = vadd.f32 %v677, %v712
      %v729 = vadd.f32 %v678, %v713
      %v730 = vadd.f32 %v679, %v714
      %v731 = vadd.f32 %v680, %v715
      %v732 = vadd.f32 %v681, %v716
      %v733 = vld [vmem:[%s682 + $0x1] sm:$0xff]
      %v734 = vld [vmem:[%s682 + $0x9] sm:$0xff]
      %v735 = vld [vmem:[%s682 + $0x19] sm:$0xff]
      %v736 = vld [vmem:[%s682 + $0x21] sm:$0xff]
      %v737 = vld [vmem:[%s682 + $0x31] sm:$0xff]
      %v738 = vld [vmem:[%s682 + $0x39] sm:$0xff]
      %v739 = vld [vmem:[%s682 + $0x49] sm:$0xff]
      %v740 = vld [vmem:[%s682 + $0x51] sm:$0xff]
      %v741 = vld [vmem:[%s682 + $0x61] sm:$0xff]
      %v742 = vld [vmem:[%s682 + $0x69] sm:$0xff]
      %v743 = vld [vmem:[%s682 + $0x79] sm:$0xff]
      %v744 = vld [vmem:[%s682 + $0x81] sm:$0xff]
      %v745 = vld [vmem:[%s682 + $0x91] sm:$0xff]
      %v746 = vld [vmem:[%s682 + $0x99] sm:$0xff]
      %v747 = vld [vmem:[%s682 + $0xa9] sm:$0xff]
      %v748 = vld [vmem:[%s682 + $0xb1] sm:$0xff]
      %v749 = vld [vmem:[%s3 + $0x4] sm:$0x1]
      %v750 = vperm.slane %v749, 0
      %v751 = vmul.f32 %v733, %v750
      %v752 = vmul.f32 %v734, %v750
      %v753 = vmul.f32 %v735, %v750
      %v754 = vmul.f32 %v736, %v750
      %v755 = vmul.f32 %v737, %v750
      %v756 = vmul.f32 %v738, %v750
      %v757 = vmul.f32 %v739, %v750
      %v758 = vmul.f32 %v740, %v750
      %v759 = vmul.f32 %v741, %v750
      %v760 = vmul.f32 %v742, %v750
      %v761 = vmul.f32 %v743, %v750
      %v762 = vmul.f32 %v744, %v750
      %v763 = vmul.f32 %v745, %v750
      %v764 = vmul.f32 %v746, %v750
      %v765 = vmul.f32 %v747, %v750
      %v766 = vmul.f32 %v748, %v750
      %v767 = vadd.f32 %v717, %v751
      %v768 = vadd.f32 %v718, %v752
      %v769 = vadd.f32 %v719, %v753
      %v770 = vadd.f32 %v720, %v754
      %v771 = vadd.f32 %v721, %v755
      %v772 = vadd.f32 %v722, %v756
      %v773 = vadd.f32 %v723, %v757
      %v774 = vadd.f32 %v724, %v758
      %v775 = vadd.f32 %v725, %v759
      %v776 = vadd.f32 %v726, %v760
      %v777 = vadd.f32 %v727, %v761
      %v778 = vadd.f32 %v728, %v762
      %v779 = vadd.f32 %v729, %v763
      %v780 = vadd.f32 %v730, %v764
      %v781 = vadd.f32 %v731, %v765
      %v782 = vadd.f32 %v732, %v766
      %v783 = vld [vmem:[%s682 + $0x2] sm:$0xff]
      %v784 = vld [vmem:[%s682 + $0xa] sm:$0xff]
      %v785 = vld [vmem:[%s682 + $0x1a] sm:$0xff]
      %v786 = vld [vmem:[%s682 + $0x22] sm:$0xff]
      %v787 = vld [vmem:[%s682 + $0x32] sm:$0xff]
      %v788 = vld [vmem:[%s682 + $0x3a] sm:$0xff]
      %v789 = vld [vmem:[%s682 + $0x4a] sm:$0xff]
      %v790 = vld [vmem:[%s682 + $0x52] sm:$0xff]
      %v791 = vld [vmem:[%s682 + $0x62] sm:$0xff]
      %v792 = vld [vmem:[%s682 + $0x6a] sm:$0xff]
      %v793 = vld [vmem:[%s682 + $0x7a] sm:$0xff]
      %v794 = vld [vmem:[%s682 + $0x82] sm:$0xff]
      %v795 = vld [vmem:[%s682 + $0x92] sm:$0xff]
      %v796 = vld [vmem:[%s682 + $0x9a] sm:$0xff]
      %v797 = vld [vmem:[%s682 + $0xaa] sm:$0xff]
      %v798 = vld [vmem:[%s682 + $0xb2] sm:$0xff]
      %v799 = vld [vmem:[%s3 + $0x5] sm:$0x1]
      %v800 = vperm.slane %v799, 0
      %v801 = vmul.f32 %v783, %v800
      %v802 = vmul.f32 %v784, %v800
      %v803 = vmul.f32 %v785, %v800
      %v804 = vmul.f32 %v786, %v800
      %v805 = vmul.f32 %v787, %v800
      %v806 = vmul.f32 %v788, %v800
      %v807 = vmul.f32 %v789, %v800
      %v808 = vmul.f32 %v790, %v800
      %v809 = vmul.f32 %v791, %v800
      %v810 = vmul.f32 %v792, %v800
      %v811 = vmul.f32 %v793, %v800
      %v812 = vmul.f32 %v794, %v800
      %v813 = vmul.f32 %v795, %v800
      %v814 = vmul.f32 %v796, %v800
      %v815 = vmul.f32 %v797, %v800
      %v816 = vmul.f32 %v798, %v800
      %v817 = vadd.f32 %v767, %v801
      %v818 = vadd.f32 %v768, %v802
      %v819 = vadd.f32 %v769, %v803
      %v820 = vadd.f32 %v770, %v804
      %v821 = vadd.f32 %v771, %v805
      %v822 = vadd.f32 %v772, %v806
      %v823 = vadd.f32 %v773, %v807
      %v824 = vadd.f32 %v774, %v808
      %v825 = vadd.f32 %v775, %v809
      %v826 = vadd.f32 %v776, %v810
      %v827 = vadd.f32 %v777, %v811
      %v828 = vadd.f32 %v778, %v812
      %v829 = vadd.f32 %v779, %v813
      %v830 = vadd.f32 %v780, %v814
      %v831 = vadd.f32 %v781, %v815
      %v832 = vadd.f32 %v782, %v816
      %s833 = scalar_lea.vmem [#allocation2], 48
      %v834 = vld [vmem:[%s833] sm:$0xff]
      %v835 = vld [vmem:[%s833 + $0x8] sm:$0xff]
      %v836 = vld [vmem:[%s833 + $0x18] sm:$0xff]
      %v837 = vld [vmem:[%s833 + $0x20] sm:$0xff]
      %v838 = vld [vmem:[%s833 + $0x30] sm:$0xff]
      %v839 = vld [vmem:[%s833 + $0x38] sm:$0xff]
      %v840 = vld [vmem:[%s833 + $0x48] sm:$0xff]
      %v841 = vld [vmem:[%s833 + $0x50] sm:$0xff]
      %v842 = vld [vmem:[%s833 + $0x60] sm:$0xff]
      %v843 = vld [vmem:[%s833 + $0x68] sm:$0xff]
      %v844 = vld [vmem:[%s833 + $0x78] sm:$0xff]
      %v845 = vld [vmem:[%s833 + $0x80] sm:$0xff]
      %v846 = vld [vmem:[%s833 + $0x90] sm:$0xff]
      %v847 = vld [vmem:[%s833 + $0x98] sm:$0xff]
      %v848 = vld [vmem:[%s833 + $0xa8] sm:$0xff]
      %v849 = vld [vmem:[%s833 + $0xb0] sm:$0xff]
      %v850 = vld [vmem:[%s3 + $0x6] sm:$0x1]
      %v851 = vperm.slane %v850, 0
      %v852 = vmul.f32 %v834, %v851
      %v853 = vmul.f32 %v835, %v851
      %v854 = vmul.f32 %v836, %v851
      %v855 = vmul.f32 %v837, %v851
      %v856 = vmul.f32 %v838, %v851
      %v857 = vmul.f32 %v839, %v851
      %v858 = vmul.f32 %v840, %v851
      %v859 = vmul.f32 %v841, %v851
      %v860 = vmul.f32 %v842, %v851
      %v861 = vmul.f32 %v843, %v851
      %v862 = vmul.f32 %v844, %v851
      %v863 = vmul.f32 %v845, %v851
      %v864 = vmul.f32 %v846, %v851
      %v865 = vmul.f32 %v847, %v851
      %v866 = vmul.f32 %v848, %v851
      %v867 = vmul.f32 %v849, %v851
      %v868 = vadd.f32 %v817, %v852
      %v869 = vadd.f32 %v818, %v853
      %v870 = vadd.f32 %v819, %v854
      %v871 = vadd.f32 %v820, %v855
      %v872 = vadd.f32 %v821, %v856
      %v873 = vadd.f32 %v822, %v857
      %v874 = vadd.f32 %v823, %v858
      %v875 = vadd.f32 %v824, %v859
      %v876 = vadd.f32 %v825, %v860
      %v877 = vadd.f32 %v826, %v861
      %v878 = vadd.f32 %v827, %v862
      %v879 = vadd.f32 %v828, %v863
      %v880 = vadd.f32 %v829, %v864
      %v881 = vadd.f32 %v830, %v865
      %v882 = vadd.f32 %v831, %v866
      %v883 = vadd.f32 %v832, %v867
      %v884 = vld [vmem:[%s833 + $0x1] sm:$0xff]
      %v885 = vld [vmem:[%s833 + $0x9] sm:$0xff]
      %v886 = vld [vmem:[%s833 + $0x19] sm:$0xff]
      %v887 = vld [vmem:[%s833 + $0x21] sm:$0xff]
      %v888 = vld [vmem:[%s833 + $0x31] sm:$0xff]
      %v889 = vld [vmem:[%s833 + $0x39] sm:$0xff]
      %v890 = vld [vmem:[%s833 + $0x49] sm:$0xff]
      %v891 = vld [vmem:[%s833 + $0x51] sm:$0xff]
      %v892 = vld [vmem:[%s833 + $0x61] sm:$0xff]
      %v893 = vld [vmem:[%s833 + $0x69] sm:$0xff]
      %v894 = vld [vmem:[%s833 + $0x79] sm:$0xff]
      %v895 = vld [vmem:[%s833 + $0x81] sm:$0xff]
      %v896 = vld [vmem:[%s833 + $0x91] sm:$0xff]
      %v897 = vld [vmem:[%s833 + $0x99] sm:$0xff]
      %v898 = vld [vmem:[%s833 + $0xa9] sm:$0xff]
      %v899 = vld [vmem:[%s833 + $0xb1] sm:$0xff]
      %v900 = vld [vmem:[%s3 + $0x7] sm:$0x1]
      %v901 = vperm.slane %v900, 0
      %v902 = vmul.f32 %v884, %v901
      %v903 = vmul.f32 %v885, %v901
      %v904 = vmul.f32 %v886, %v901
      %v905 = vmul.f32 %v887, %v901
      %v906 = vmul.f32 %v888, %v901
      %v907 = vmul.f32 %v889, %v901
      %v908 = vmul.f32 %v890, %v901
      %v909 = vmul.f32 %v891, %v901
      %v910 = vmul.f32 %v892, %v901
      %v911 = vmul.f32 %v893, %v901
      %v912 = vmul.f32 %v894, %v901
      %v913 = vmul.f32 %v895, %v901
      %v914 = vmul.f32 %v896, %v901
      %v915 = vmul.f32 %v897, %v901
      %v916 = vmul.f32 %v898, %v901
      %v917 = vmul.f32 %v899, %v901
      %v918 = vadd.f32 %v868, %v902
      %v919 = vadd.f32 %v869, %v903
      %v920 = vadd.f32 %v870, %v904
      %v921 = vadd.f32 %v871, %v905
      %v922 = vadd.f32 %v872, %v906
      %v923 = vadd.f32 %v873, %v907
      %v924 = vadd.f32 %v874, %v908
      %v925 = vadd.f32 %v875, %v909
      %v926 = vadd.f32 %v876, %v910
      %v927 = vadd.f32 %v877, %v911
      %v928 = vadd.f32 %v878, %v912
      %v929 = vadd.f32 %v879, %v913
      %v930 = vadd.f32 %v880, %v914
      %v931 = vadd.f32 %v881, %v915
      %v932 = vadd.f32 %v882, %v916
      %v933 = vadd.f32 %v883, %v917
      %v934 = vld [vmem:[%s833 + $0x2] sm:$0xff]
      %v935 = vld [vmem:[%s833 + $0xa] sm:$0xff]
      %v936 = vld [vmem:[%s833 + $0x1a] sm:$0xff]
      %v937 = vld [vmem:[%s833 + $0x22] sm:$0xff]
      %v938 = vld [vmem:[%s833 + $0x32] sm:$0xff]
      %v939 = vld [vmem:[%s833 + $0x3a] sm:$0xff]
      %v940 = vld [vmem:[%s833 + $0x4a] sm:$0xff]
      %v941 = vld [vmem:[%s833 + $0x52] sm:$0xff]
      %v942 = vld [vmem:[%s833 + $0x62] sm:$0xff]
      %v943 = vld [vmem:[%s833 + $0x6a] sm:$0xff]
      %v944 = vld [vmem:[%s833 + $0x7a] sm:$0xff]
      %v945 = vld [vmem:[%s833 + $0x82] sm:$0xff]
      %v946 = vld [vmem:[%s833 + $0x92] sm:$0xff]
      %v947 = vld [vmem:[%s833 + $0x9a] sm:$0xff]
      %v948 = vld [vmem:[%s833 + $0xaa] sm:$0xff]
      %v949 = vld [vmem:[%s833 + $0xb2] sm:$0xff]
      %v950 = vld [vmem:[%s3 + $0x8] sm:$0x1]
      %v951 = vperm.slane %v950, 0
      %v952 = vmul.f32 %v934, %v951
      %v953 = vmul.f32 %v935, %v951
      %v954 = vmul.f32 %v936, %v951
      %v955 = vmul.f32 %v937, %v951
      %v956 = vmul.f32 %v938, %v951
      %v957 = vmul.f32 %v939, %v951
      %v958 = vmul.f32 %v940, %v951
      %v959 = vmul.f32 %v941, %v951
      %v960 = vmul.f32 %v942, %v951
      %v961 = vmul.f32 %v943, %v951
      %v962 = vmul.f32 %v944, %v951
      %v963 = vmul.f32 %v945, %v951
      %v964 = vmul.f32 %v946, %v951
      %v965 = vmul.f32 %v947, %v951
      %v966 = vmul.f32 %v948, %v951
      %v967 = vmul.f32 %v949, %v951
      %v968 = vadd.f32 %v918, %v952
      %v969 = vadd.f32 %v919, %v953
      %v970 = vadd.f32 %v920, %v954
      %v971 = vadd.f32 %v921, %v955
      %v972 = vadd.f32 %v922, %v956
      %v973 = vadd.f32 %v923, %v957
      %v974 = vadd.f32 %v924, %v958
      %v975 = vadd.f32 %v925, %v959
      %v976 = vadd.f32 %v926, %v960
      %v977 = vadd.f32 %v927, %v961
      %v978 = vadd.f32 %v928, %v962
      %v979 = vadd.f32 %v929, %v963
      %v980 = vadd.f32 %v930, %v964
      %v981 = vadd.f32 %v931, %v965
      %v982 = vadd.f32 %v932, %v966
      %v983 = vadd.f32 %v933, %v967
      %v984 = vld [vmem:[%s4] sm:$0x1]
      %v986 = vperm.slane %v984, 0
      %v988 = vadd.f32 %v968, %v986
      %v989 = vadd.f32 %v969, %v986
      %v990 = vadd.f32 %v970, %v986
      %v991 = vadd.f32 %v971, %v986
      %v992 = vadd.f32 %v972, %v986
      %v993 = vadd.f32 %v973, %v986
      %v994 = vadd.f32 %v974, %v986
      %v995 = vadd.f32 %v975, %v986
      %v996 = vadd.f32 %v976, %v986
      %v997 = vadd.f32 %v977, %v986
      %v998 = vadd.f32 %v978, %v986
      %v999 = vadd.f32 %v979, %v986
      %v1000 = vadd.f32 %v980, %v986
      %v1001 = vadd.f32 %v981, %v986
      %v1002 = vadd.f32 %v982, %v986
      %v1003 = vadd.f32 %v983, %v986
      %v1004 = vmax.f32 %v988, 0.0
      %v1005 = vmax.f32 %v989, 0.0
      %v1006 = vmax.f32 %v990, 0.0
      %v1007 = vmax.f32 %v991, 0.0
      %v1008 = vmax.f32 %v992, 0.0
      %v1009 = vmax.f32 %v993, 0.0
      %v1010 = vmax.f32 %v994, 0.0
      %v1011 = vmax.f32 %v995, 0.0
      %v1012 = vmax.f32 %v996, 0.0
      %v1013 = vmax.f32 %v997, 0.0
      %v1014 = vmax.f32 %v998, 0.0
      %v1015 = vmax.f32 %v999, 0.0
      %v1016 = vmax.f32 %v1000, 0.0
      %v1017 = vmax.f32 %v1001, 0.0
      %v1018 = vmax.f32 %v1002, 0.0
      %v1019 = vmax.f32 %v1003, 0.0
      %v1020 = vmin.f32 %v1004, 6.0
      %v1021 = vmin.f32 %v1005, 6.0
      %v1022 = vmin.f32 %v1006, 6.0
      %v1023 = vmin.f32 %v1007, 6.0
      %v1024 = vmin.f32 %v1008, 6.0
      %v1025 = vmin.f32 %v1009, 6.0
      %v1026 = vmin.f32 %v1010, 6.0
      %v1027 = vmin.f32 %v1011, 6.0
      %v1028 = vmin.f32 %v1012, 6.0
      %v1029 = vmin.f32 %v1013, 6.0
      %v1030 = vmin.f32 %v1014, 6.0
      %v1031 = vmin.f32 %v1015, 6.0
      %v1032 = vmin.f32 %v1016, 6.0
      %v1033 = vmin.f32 %v1017, 6.0
      %v1034 = vmin.f32 %v1018, 6.0
      %v1035 = vmin.f32 %v1019, 6.0
      %v1036 = vpack.c.bf16 %v1021, %v1020
      %v1037 = vpack.c.bf16 %v1023, %v1022
      %v1038 = vpack.c.bf16 %v1025, %v1024
      %v1039 = vpack.c.bf16 %v1027, %v1026
      %v1040 = vpack.c.bf16 %v1029, %v1028
      %v1041 = vpack.c.bf16 %v1031, %v1030
      %v1042 = vpack.c.bf16 %v1033, %v1032
      %v1043 = vpack.c.bf16 %v1035, %v1034
      %v1044 = vld [vmem:[%s5] sm:$0xf]
      %v1045 = vld [vmem:[%s5 + $0x4] sm:$0xf]
      %v1046 = vld [vmem:[%s5 + $0x8] sm:$0xf]
      %v1047 = vld [vmem:[%s5 + $0xc] sm:$0xf]
      %v1048 = vld [vmem:[%s5 + $0x10] sm:$0xf]
      %v1049 = vld [vmem:[%s5 + $0x14] sm:$0xf]
      %v1050 = vld [vmem:[%s5 + $0x18] sm:$0xf]
      %v1051 = vld [vmem:[%s5 + $0x1c] sm:$0xf]
      %v1052 = vld [vmem:[%s5 + $0x20] sm:$0xf]
      %v1053 = vld [vmem:[%s5 + $0x24] sm:$0xf]
      %v1054 = vld [vmem:[%s5 + $0x28] sm:$0xf]
      %v1055 = vld [vmem:[%s5 + $0x2c] sm:$0xf]
      %v1056 = vld [vmem:[%s5 + $0x30] sm:$0xf]
      %v1057 = vld [vmem:[%s5 + $0x34] sm:$0xf]
      %v1058 = vld [vmem:[%s5 + $0x38] sm:$0xf]
      %v1059 = vld [vmem:[%s5 + $0x3c] sm:$0xf]
      %v1060 = vld [vmem:[%s6] sm:$0x1]
      %v1062 = vperm.slane %v1060, 0
      %v1080 = vunpack.c.l.b16 %v1044
      %v1081 = vunpack.c.l.b16 %v1045
      %v1082 = vunpack.c.l.b16 %v1046
      %v1083 = vunpack.c.l.b16 %v1047
      %v1084 = vunpack.c.l.b16 %v1048
      %v1085 = vunpack.c.l.b16 %v1049
      %v1086 = vunpack.c.l.b16 %v1050
      %v1087 = vunpack.c.l.b16 %v1051
      %v1088 = vunpack.c.l.b16 %v1052
      %v1089 = vunpack.c.l.b16 %v1053
      %v1090 = vunpack.c.l.b16 %v1054
      %v1091 = vunpack.c.l.b16 %v1055
      %v1092 = vunpack.c.l.b16 %v1056
      %v1093 = vunpack.c.l.b16 %v1057
      %v1094 = vunpack.c.l.b16 %v1058
      %v1095 = vunpack.c.l.b16 %v1059
      %v1096 = vpack.c.b16 %v1081, %v1080
      %v1097 = vpack.c.b16 %v1083, %v1082
      %v1098 = vpack.c.b16 %v1085, %v1084
      %v1099 = vpack.c.b16 %v1087, %v1086
      %v1100 = vpack.c.b16 %v1089, %v1088
      %v1101 = vpack.c.b16 %v1091, %v1090
      %v1102 = vpack.c.b16 %v1093, %v1092
      %v1103 = vpack.c.b16 %v1095, %v1094
      %1112 = vmatpush.bf16.msra.mxu0 %v1103
      %1113 = vmatpush.bf16.msra.mxu0 %v1102
      %1114 = vmatpush.bf16.msra.mxu0 %v1101
      %1115 = vmatpush.bf16.msra.mxu0 %v1100
      %1116 = vmatpush.bf16.msra.mxu0 %v1099
      %1117 = vmatpush.bf16.msra.mxu0 %v1098
      %1118 = vmatpush.bf16.msra.mxu0 %v1097
      %1119 = vmatpush.bf16.msra.mxu0 %v1096
      %1120 = vmatmul.bf16.gmra.mxu0 %v1036
      %v1121 = vpop.f32.mrf.mxu0
      %v1122 = vadd.f32 %v1062, %v1121
      %v1123 = vpop.f32.mrf.mxu0
      %v1124 = vadd.f32 %v1062, %v1123
      %1125 = vmatmul.bf16.gmra.mxu0 %v1037
      %v1126 = vpop.f32.mrf.mxu0
      %v1127 = vadd.f32 %v1062, %v1126
      %v1128 = vpop.f32.mrf.mxu0
      %v1129 = vadd.f32 %v1062, %v1128
      %1130 = vmatmul.bf16.gmra.mxu0 %v1038
      %v1131 = vpop.f32.mrf.mxu0
      %v1132 = vadd.f32 %v1062, %v1131
      %v1133 = vpop.f32.mrf.mxu0
      %v1134 = vadd.f32 %v1062, %v1133
      %1135 = vmatmul.bf16.gmra.mxu0 %v1039
      %v1136 = vpop.f32.mrf.mxu0
      %v1137 = vadd.f32 %v1062, %v1136
      %v1138 = vpop.f32.mrf.mxu0
      %v1139 = vadd.f32 %v1062, %v1138
      %1140 = vmatmul.bf16.gmra.mxu0 %v1040
      %v1141 = vpop.f32.mrf.mxu0
      %v1142 = vadd.f32 %v1062, %v1141
      %v1143 = vpop.f32.mrf.mxu0
      %v1144 = vadd.f32 %v1062, %v1143
      %1145 = vmatmul.bf16.gmra.mxu0 %v1041
      %v1146 = vpop.f32.mrf.mxu0
      %v1147 = vadd.f32 %v1062, %v1146
      %v1148 = vpop.f32.mrf.mxu0
      %v1149 = vadd.f32 %v1062, %v1148
      %1150 = vmatmul.bf16.gmra.mxu0 %v1042
      %v1151 = vpop.f32.mrf.mxu0
      %v1152 = vadd.f32 %v1062, %v1151
      %v1153 = vpop.f32.mrf.mxu0
      %v1154 = vadd.f32 %v1062, %v1153
      %1155 = vmatmul.bf16.gmra.mxu0 %v1043
      %v1156 = vpop.f32.mrf.mxu0
      %v1157 = vadd.f32 %v1062, %v1156
      %v1158 = vpop.f32.mrf.mxu0
      %v1159 = vadd.f32 %v1062, %v1158
      %1160 = vdwg.mxu0
      %v1161 = vadd.f32 %v1122, %v310
      %v1162 = vadd.f32 %v1124, %v311
      %v1163 = vadd.f32 %v1127, %v312
      %v1164 = vadd.f32 %v1129, %v313
      %v1165 = vadd.f32 %v1132, %v314
      %v1166 = vadd.f32 %v1134, %v315
      %v1167 = vadd.f32 %v1137, %v316
      %v1168 = vadd.f32 %v1139, %v317
      %v1169 = vadd.f32 %v1142, %v318
      %v1170 = vadd.f32 %v1144, %v319
      %v1171 = vadd.f32 %v1147, %v320
      %v1172 = vadd.f32 %v1149, %v321
      %v1173 = vadd.f32 %v1152, %v322
      %v1174 = vadd.f32 %v1154, %v323
      %v1175 = vadd.f32 %v1157, %v324
      %v1176 = vadd.f32 %v1159, %v325
      %1177 = vst.msk [vmem:[%s302] sm:$0xff] %vm343, %v1161
      %1178 = vst.msk [vmem:[%s302 + $0x8] sm:$0xff] %vm343, %v1162
      %1179 = vst.msk [vmem:[%s302 + $0x10] sm:$0xff] %vm343, %v1163
      %1180 = vst.msk [vmem:[%s302 + $0x18] sm:$0xff] %vm343, %v1164
      %1181 = vst.msk [vmem:[%s302 + $0x20] sm:$0xff] %vm343, %v1165
      %1182 = vst.msk [vmem:[%s302 + $0x28] sm:$0xff] %vm343, %v1166
      %1183 = vst.msk [vmem:[%s302 + $0x30] sm:$0xff] %vm343, %v1167
      %1184 = vst.msk [vmem:[%s302 + $0x38] sm:$0xff] %vm343, %v1168
      %1185 = vst.msk [vmem:[%s302 + $0x40] sm:$0xff] %vm343, %v1169
      %1186 = vst.msk [vmem:[%s302 + $0x48] sm:$0xff] %vm343, %v1170
      %1187 = vst.msk [vmem:[%s302 + $0x50] sm:$0xff] %vm343, %v1171
      %1188 = vst.msk [vmem:[%s302 + $0x58] sm:$0xff] %vm343, %v1172
      %1189 = vst.msk [vmem:[%s302 + $0x60] sm:$0xff] %vm343, %v1173
      %1190 = vst.msk [vmem:[%s302 + $0x68] sm:$0xff] %vm343, %v1174
      %1191 = vst.msk [vmem:[%s302 + $0x70] sm:$0xff] %vm343, %v1175
      %1192 = vst.msk [vmem:[%s302 + $0x78] sm:$0xff] %vm343, %v1176
      %s1193 = smul.u32 8, %s23
      %p1194 = scmp.lt.s32.totalorder %s22, 1
      %s1195 = scalar_select %p1194, %s22, 1
      %p1196 = scmp.lt.s32.totalorder %s1193, 15
      %s1197 = scalar_select %p1196, %s1193, 15
      %s1198 = smul.addr %s1197, 2
      %s1199 = smul.addr %s1195, 32
      %s1200 = sadd.s32 %s1198, %s1199
      %s1201 = smul.addr %s1200, 8
      %s1202 = scalar_lea.vmem %s7, %s1201
      // Predicated region
      $region57: #{inverted_residual.1} parent=47 // pred_check
        %p1203 = pneg %p202
      $region58: #{inverted_residual.1} parent=47 // pred_check_branch
        %1205 = sbr.rel (%p1203) target = $region60
      $region59: #{inverted_residual.1} parent=47 // pred_region
        %s1206 = smul.u32 8, %s23
      $region60: #{inverted_residual.1} parent=47 // pred_fallthru
        _
    $region48: #{inverted_residual.1} parent=5 // pred_fallthru
      _
    %p1207 = scmp.le.s32.totalorder 2, %s13
    // Predicated region
    $region61: #{inverted_residual.1} parent=5 // pred_check
      %p1208 = pneg %p1207
    $region62: #{inverted_residual.1} parent=5 // pred_check_branch
      %1210 = sbr.rel (%p1208) target = $region64
    $region63: #{inverted_residual.1} parent=5 // pred_region
      %s1211 = ssub.s32 %s13, 2
      // Predicated region
      $region65: #{inverted_residual.1} parent=63 // pred_check
        %p1212 = pneg %p208
      $region66: #{inverted_residual.1} parent=63 // pred_check_branch
        %1214 = sbr.rel (%p1212) target = $region68
      $region67: #{inverted_residual.1} parent=63 // pred_region
        %s1215 = smul.u32 8, %s25
        %p1216 = scmp.lt.s32.totalorder %s24, 1
        %s1217 = scalar_select %p1216, %s24, 1
        %p1218 = scmp.lt.s32.totalorder %s1215, 15
        %s1219 = scalar_select %p1218, %s1215, 15
        %s1220 = smul.addr %s1219, 2
        %s1221 = smul.addr %s1217, 32
        %s1222 = sadd.s32 %s1220, %s1221
        %s1223 = smul.addr %s1222, 8
        %s1224 = scalar_lea.vmem %s7, %s1223
      $region68: #{inverted_residual.1} parent=63 // pred_fallthru
        _
    $region64: #{inverted_residual.1} parent=5 // pred_fallthru
      _
  $region6: #{inverted_residual.1} parent=0 // loop_footer
    %s17 = sadd.s32 1, %s13
  $region7: #{inverted_residual.1} parent=0 // loop_footer_branch
    %12 = sbr.rel target = $region3
  $region8: #{inverted_residual.1} parent=0 // loop_exit
    _

</llo_original>
